<compile_context>
chip_gen: v7x
topology: tpu7x:2x2x1
jax: 0.10.0
libtpu: 0.0.40
codegen_flags: <defaults>
</compile_context>

<pallas_src>
import jax
import jax.numpy as jnp
from jax import lax
from jax.experimental import pallas as pl
from jax.experimental.pallas import tpu as pltpu


def add_conv1x1_kernel(a_ref, b_ref, w_ref, o_ref):
    # Elementwise add in f32 (VPU), a single cast to bf16 for the MXU.
    x = (a_ref[...] + b_ref[...]).astype(jnp.bfloat16)          # (Cin, M)
    # Native (N,K)x(K,M) contraction: weight rows (Cout-tile, Cin) against the
    # channel-major activation block.  f32 accumulation, no transposes anywhere.
    y = lax.dot_general(
        w_ref[...], x,
        dimension_numbers=(((1,), (0,)), ((), ())),
        preferred_element_type=jnp.float32,
    )                                                            # (tn, M)
    o_ref[...] = y.astype(o_ref.dtype)


def _default_row_blocks():
    # v7x has 2 TensorCores/chip -> shard the Cout (weight-row) dimension.
    # v5e / v6e are single-core: extra grid steps are pure overhead here.
    try:
        kind = jax.devices()[0].device_kind.lower()
    except Exception:
        return 1
    return 2 if ("v7" in kind or "7x" in kind) else 1


def add_conv1x1(a_cm, b_cm, w_oc, *, num_row_blocks=None):
    """a_cm, b_cm: (Cin, M) f32 ; w_oc: (Cout, Cin) bf16 -> (Cout, M) f32."""
    Cin, M = a_cm.shape
    Cout = w_oc.shape[0]
    assert w_oc.shape[1] == Cin
    if num_row_blocks is None:
        num_row_blocks = _default_row_blocks()
    assert Cout % num_row_blocks == 0
    tn = Cout // num_row_blocks
    assert tn % 8 == 0  # sublane-aligned weight/output row tile

    # Honest byte counts: f32 inputs, bf16 weight, f32 output (no extra layout ops).
    cost = pl.CostEstimate(
        flops=2 * M * Cin * Cout,
        transcendentals=0,
        bytes_accessed=(2 * Cin * M * 4) + (Cout * Cin * 2) + (Cout * M * 4),
    )

    return pl.pallas_call(
        add_conv1x1_kernel,
        out_shape=jax.ShapeDtypeStruct((Cout, M), jnp.float32),
        grid=(num_row_blocks,),
        in_specs=[
            pl.BlockSpec((Cin, M), lambda i: (0, 0)),    # A (full, VMEM-resident)
            pl.BlockSpec((Cin, M), lambda i: (0, 0)),    # B (full, VMEM-resident)
            pl.BlockSpec((tn, Cin), lambda i: (i, 0)),   # weight row tile (native layout)
        ],
        out_specs=pl.BlockSpec((tn, M), lambda i: (i, 0)),
        compiler_params=pltpu.CompilerParams(
            dimension_semantics=("parallel",),
        ),
        cost_estimate=cost,
    )(a_cm, b_cm, w_oc)


def prepare_weight(conv_weight):
    """One-time param prep: (Cout, Cin, 1, 1) f32 -> (Cout, Cin) bf16.

    Native Conv2d orientation is kept (no transpose ever materialized); the
    bf16 cast is done once at prep time so the per-call weight stream is 768 KB.
    """
    Cout, Cin = conv_weight.shape[0], conv_weight.shape[1]
    return conv_weight.reshape(Cout, Cin).astype(jnp.bfloat16)


def module_forward(x522, x507, w_prepped):
    """x522, x507: NCHW (1, 256, 7, 7) f32; w_prepped: (1536, 256) bf16 -> NCHW (1,1536,7,7) f32."""
    N, Cin, H, W = x522.shape
    assert N == 1, "module spec is batch-1"
    Cout = w_prepped.shape[0]

    # NCHW -> (Cin, H*W): contiguous reshape, no data movement, no dispatch cost.
    a_cm = x522.reshape(Cin, H * W)
    b_cm = x507.reshape(Cin, H * W)

    y_cm = add_conv1x1(a_cm, b_cm, w_prepped)                    # (Cout, H*W)

    # (Cout, H*W) -> NCHW: contiguous reshape, no data movement.
    return y_cm.reshape(N, Cout, H, W)


if __name__ == "__main__":
    key = jax.random.PRNGKey(0)
    k1, k2, k3 = jax.random.split(key, 3)

    # Shapes match the PyTorch module exactly (already small).
    x522 = jax.random.normal(k1, (1, 256, 7, 7), dtype=jnp.float32)
    x507 = jax.random.normal(k2, (1, 256, 7, 7), dtype=jnp.float32)
    conv_w = jax.random.normal(k3, (1536, 256, 1, 1), dtype=jnp.float32) * (1.0 / 16.0)

    # One-time weight prep (lives at model-param-prep time in a real model).
    w_prepped = prepare_weight(conv_w)

    out = module_forward(x522, x507, w_prepped)
    out = jax.block_until_ready(out)
    assert out.shape == (1, 1536, 7, 7), out.shape

    # Precision-matched reference: same bf16 rounding of (x+x) and weight,
    # f32 accumulation — validates the kernel math itself.
    xsum_bf16 = (x522 + x507).astype(jnp.bfloat16).astype(jnp.float32)
    w_bf16 = w_prepped.astype(jnp.float32)
    ref_bf16 = jnp.einsum("nchw,oc->nohw", xsum_bf16, w_bf16)
    assert jnp.allclose(out, ref_bf16, atol=1e-2, rtol=1e-2)

    # Loose sanity check against the full-f32 reference (bf16 weight quantization noise).
    # TODO(synk): if exact f32 parity with the PyTorch module is required, keep the
    # weight in f32 (doubles the 768 KB weight stream) instead of bf16.
    ref_f32 = jnp.einsum("nchw,oc->nohw", x522 + x507, conv_w.reshape(1536, 256))
    assert jnp.allclose(out, ref_f32, atol=1e-1, rtol=1e-1)

    print("KERNEL_OK")
</pallas_src>

<mosaic_0001>
module attributes {stable_mosaic.version = 11 : i64} {
  func.func @add_conv1x1_kernel(%arg0: i32, %arg1: memref<256x49xf32, #tpu.memory_space<vmem>>, %arg2: memref<256x49xf32, #tpu.memory_space<vmem>>, %arg3: memref<1536x256xbf16, #tpu.memory_space<vmem>>, %arg4: memref<1536x49xf32, #tpu.memory_space<vmem>>) attributes {dimension_semantics = [#tpu.dimension_semantics<parallel>], iteration_bounds = array<i64: 1>, scalar_prefetch = 0 : i64, scratch_operands = 0 : i64, tpu.core_type = #tpu.core_type<tc>, window_params = [{pipeline_mode = #tpu.pipeline_mode<synchronous>, transform_indices = @transform_0, window_bounds = array<i64: 256, 49>}, {pipeline_mode = #tpu.pipeline_mode<synchronous>, transform_indices = @transform_1, window_bounds = array<i64: 256, 49>}, {transform_indices = @transform_2, window_bounds = array<i64: 1536, 256>}, {transform_indices = @transform_3, window_bounds = array<i64: 1536, 49>}]} {
    %c0 = arith.constant 0 : index
    %c0_0 = arith.constant 0 : index
    %0 = vector.load %arg1[%c0, %c0_0] : memref<256x49xf32, #tpu.memory_space<vmem>>, vector<256x49xf32>
    %c0_1 = arith.constant 0 : index
    %c0_2 = arith.constant 0 : index
    %1 = vector.load %arg2[%c0_1, %c0_2] : memref<256x49xf32, #tpu.memory_space<vmem>>, vector<256x49xf32>
    %2 = arith.addf %0, %1 : vector<256x49xf32>
    %3 = arith.truncf %2 : vector<256x49xf32> to vector<256x49xbf16>
    %c0_3 = arith.constant 0 : index
    %c0_4 = arith.constant 0 : index
    %4 = vector.load %arg3[%c0_3, %c0_4] : memref<1536x256xbf16, #tpu.memory_space<vmem>>, vector<1536x256xbf16>
    %cst = arith.constant dense<0.000000e+00> : vector<1536x49xf32>
    %5 = tpu.matmul %4, %3, %cst {dimension_numbers = #tpu.dot_dimension_numbers<[1], [0], [0], [1], [0, 0, 1, 1], [], []>} : vector<1536x256xbf16>, vector<256x49xbf16>, vector<1536x49xf32> -> vector<1536x49xf32>
    %c0_5 = arith.constant 0 : index
    %c0_6 = arith.constant 0 : index
    %6 = vector.load %arg4[%c0_5, %c0_6] : memref<1536x49xf32, #tpu.memory_space<vmem>>, vector<1536x49xf32>
    tpu.vector_store %arg4[%c0_5, %c0_6], %5 {strides = array<i32>} : memref<1536x49xf32, #tpu.memory_space<vmem>>, vector<1536x49xf32>,
    return
  }
  func.func @transform_0(%arg0: i32) -> (i32, i32) {
    %c0_i32 = arith.constant 0 : i32
    %c0_i32_0 = arith.constant 0 : i32
    %c0_i32_1 = arith.constant 0 : i32
    return %c0_i32, %c0_i32_0 : i32, i32
  }
  func.func @transform_1(%arg0: i32) -> (i32, i32) {
    %c0_i32 = arith.constant 0 : i32
    %c0_i32_0 = arith.constant 0 : i32
    %c0_i32_1 = arith.constant 0 : i32
    return %c0_i32, %c0_i32_0 : i32, i32
  }
  func.func @transform_2(%arg0: i32) -> (i32, i32) {
    %c0_i32 = arith.constant 0 : i32
    %c0_i32_0 = arith.constant 0 : i32
    return %arg0, %c0_i32 : i32, i32
  }
  func.func @transform_3(%arg0: i32) -> (i32, i32) {
    %c0_i32 = arith.constant 0 : i32
    %c0_i32_0 = arith.constant 0 : i32
    return %arg0, %c0_i32 : i32, i32
  }
}

</mosaic_0001>

<llo_original>
// kernel: tpu_custom_call.1
$region0: #{tpu_custom_call.1}
  #allocation0 [shape = 'u32[]', space=smem, size = 0x4, offset = 0x4, fixed_abs, tag = 'smem constant byte address 0x4 - core index']
  #allocation1 [shape = 'u32[144,128]{1,0:T(1,128)}', space=vmem, size = 0x12000, scoped, tag = 'internal scratch']
  %s0 = inlined_call_operand.vmem [shape: f32[256,49], index: 0, kind: input, shape index: {}]
  %s1 = inlined_call_operand.vmem [shape: f32[256,49], index: 1, kind: input, shape index: {}]
  %s2 = inlined_call_operand.hbm [shape: bf16[1536,256], index: 2, kind: input, shape index: {}]
  %s3 = inlined_call_operand.vmem [shape: f32[1536,49], index: 3, kind: output, shape index: {}]
  %s4 = sld [smem:[#allocation0]]
  $region26: #{tpu_custom_call.1} parent=0
    _
  %s6 = ssub.s32 1, %s4
  %s7 = scalar_select 0, %s6, %s4
  $region1: #{tpu_custom_call.1} parent=0
    #allocation2 [shape = 'u8[786432]{0}', space=vmem, size = 0xc0000, scoped, tag = 'input window, operand 2, single buffered']
    #allocation3 [shape = 's32[1]{0}', space=sflag, size = 0x4, scoped, tag = 'scoped memory for tpu_custom_call.1']
    %8 = vsyncpa [#allocation3], 0
    // Predicated region
    $region2: #{tpu_custom_call.1} parent=1 // pred_check
      _
    $region3: #{tpu_custom_call.1} parent=1 // pred_check_branch
      %10 = sbr.rel (0) target = $region5
    $region4: #{tpu_custom_call.1} parent=1 // pred_region
      _
    $region5: #{tpu_custom_call.1} parent=1 // pred_fallthru
      _
    // Predicated region
    $region6: #{tpu_custom_call.1} parent=1 // pred_check
      _
    $region7: #{tpu_custom_call.1} parent=1 // pred_check_branch
      %12 = sbr.rel (0) target = $region9
    $region8: #{tpu_custom_call.1} parent=1 // pred_region
      _
    $region9: #{tpu_custom_call.1} parent=1 // pred_fallthru
      _
    // Predicated region
    $region10: #{tpu_custom_call.1} parent=1 // pred_check
      _
    $region11: #{tpu_custom_call.1} parent=1 // pred_check_branch
      %14 = sbr.rel (0) target = $region13
    $region12: #{tpu_custom_call.1} parent=1 // pred_region
      %s16 = ssub.s32 24576, 24576
      %17 = vsyncadd [#allocation3], %s16
      %s18 = sshll.u32 [#allocation2], 4
      %s19 = int_to_ptr.vmem [resolvable:$true] %s18
      %24 = dma.hbm_to_vmem [thread:$0]  %s2, 24576, %s19, [#allocation3], 128, 128, 8
    $region13: #{tpu_custom_call.1} parent=1 // pred_fallthru
      _
    // Predicated region
    $region14: #{tpu_custom_call.1} parent=1 // pred_check
      _
    $region15: #{tpu_custom_call.1} parent=1 // pred_check_branch
      %26 = sbr.rel (0) target = $region17
    $region16: #{tpu_custom_call.1} parent=1 // pred_region
      %27 = dma.done [#allocation3], 24576
    $region17: #{tpu_custom_call.1} parent=1 // pred_fallthru
      _
    %v29 = vld [vmem:[%s0] sm:$0xff]
    %v30 = vld [vmem:[%s0 + $0x8] sm:$0xff]
    %v31 = vld [vmem:[%s0 + $0x10] sm:$0xff]
    %v32 = vld [vmem:[%s0 + $0x18] sm:$0xff]
    %v33 = vld [vmem:[%s0 + $0x20] sm:$0xff]
    %v34 = vld [vmem:[%s0 + $0x28] sm:$0xff]
    %v35 = vld [vmem:[%s0 + $0x30] sm:$0xff]
    %v36 = vld [vmem:[%s0 + $0x38] sm:$0xff]
    %v37 = vld [vmem:[%s0 + $0x40] sm:$0xff]
    %v38 = vld [vmem:[%s0 + $0x48] sm:$0xff]
    %v39 = vld [vmem:[%s0 + $0x50] sm:$0xff]
    %v40 = vld [vmem:[%s0 + $0x58] sm:$0xff]
    %v41 = vld [vmem:[%s0 + $0x60] sm:$0xff]
    %v42 = vld [vmem:[%s0 + $0x68] sm:$0xff]
    %v43 = vld [vmem:[%s0 + $0x70] sm:$0xff]
    %v44 = vld [vmem:[%s0 + $0x78] sm:$0xff]
    %v45 = vld [vmem:[%s0 + $0x80] sm:$0xff]
    %v46 = vld [vmem:[%s0 + $0x88] sm:$0xff]
    %v47 = vld [vmem:[%s0 + $0x90] sm:$0xff]
    %v48 = vld [vmem:[%s0 + $0x98] sm:$0xff]
    %v49 = vld [vmem:[%s0 + $0xa0] sm:$0xff]
    %v50 = vld [vmem:[%s0 + $0xa8] sm:$0xff]
    %v51 = vld [vmem:[%s0 + $0xb0] sm:$0xff]
    %v52 = vld [vmem:[%s0 + $0xb8] sm:$0xff]
    %v53 = vld [vmem:[%s0 + $0xc0] sm:$0xff]
    %v54 = vld [vmem:[%s0 + $0xc8] sm:$0xff]
    %v55 = vld [vmem:[%s0 + $0xd0] sm:$0xff]
    %v56 = vld [vmem:[%s0 + $0xd8] sm:$0xff]
    %v57 = vld [vmem:[%s0 + $0xe0] sm:$0xff]
    %v58 = vld [vmem:[%s0 + $0xe8] sm:$0xff]
    %v59 = vld [vmem:[%s0 + $0xf0] sm:$0xff]
    %v60 = vld [vmem:[%s0 + $0xf8] sm:$0xff]
    %v61 = vld [vmem:[%s1] sm:$0xff]
    %v62 = vld [vmem:[%s1 + $0x8] sm:$0xff]
    %v63 = vld [vmem:[%s1 + $0x10] sm:$0xff]
    %v64 = vld [vmem:[%s1 + $0x18] sm:$0xff]
    %v65 = vld [vmem:[%s1 + $0x20] sm:$0xff]
    %v66 = vld [vmem:[%s1 + $0x28] sm:$0xff]
    %v67 = vld [vmem:[%s1 + $0x30] sm:$0xff]
    %v68 = vld [vmem:[%s1 + $0x38] sm:$0xff]
    %v69 = vld [vmem:[%s1 + $0x40] sm:$0xff]
    %v70 = vld [vmem:[%s1 + $0x48] sm:$0xff]
    %v71 = vld [vmem:[%s1 + $0x50] sm:$0xff]
    %v72 = vld [vmem:[%s1 + $0x58] sm:$0xff]
    %v73 = vld [vmem:[%s1 + $0x60] sm:$0xff]
    %v74 = vld [vmem:[%s1 + $0x68] sm:$0xff]
    %v75 = vld [vmem:[%s1 + $0x70] sm:$0xff]
    %v76 = vld [vmem:[%s1 + $0x78] sm:$0xff]
    %v77 = vld [vmem:[%s1 + $0x80] sm:$0xff]
    %v78 = vld [vmem:[%s1 + $0x88] sm:$0xff]
    %v79 = vld [vmem:[%s1 + $0x90] sm:$0xff]
    %v80 = vld [vmem:[%s1 + $0x98] sm:$0xff]
    %v81 = vld [vmem:[%s1 + $0xa0] sm:$0xff]
    %v82 = vld [vmem:[%s1 + $0xa8] sm:$0xff]
    %v83 = vld [vmem:[%s1 + $0xb0] sm:$0xff]
    %v84 = vld [vmem:[%s1 + $0xb8] sm:$0xff]
    %v85 = vld [vmem:[%s1 + $0xc0] sm:$0xff]
    %v86 = vld [vmem:[%s1 + $0xc8] sm:$0xff]
    %v87 = vld [vmem:[%s1 + $0xd0] sm:$0xff]
    %v88 = vld [vmem:[%s1 + $0xd8] sm:$0xff]
    %v89 = vld [vmem:[%s1 + $0xe0] sm:$0xff]
    %v90 = vld [vmem:[%s1 + $0xe8] sm:$0xff]
    %v91 = vld [vmem:[%s1 + $0xf0] sm:$0xff]
    %v92 = vld [vmem:[%s1 + $0xf8] sm:$0xff]
    %v93 = vadd.f32 %v29, %v61
    %v94 = vadd.f32 %v30, %v62
    %v95 = vadd.f32 %v31, %v63
    %v96 = vadd.f32 %v32, %v64
    %v97 = vadd.f32 %v33, %v65
    %v98 = vadd.f32 %v34, %v66
    %v99 = vadd.f32 %v35, %v67
    %v100 = vadd.f32 %v36, %v68
    %v101 = vadd.f32 %v37, %v69
    %v102 = vadd.f32 %v38, %v70
    %v103 = vadd.f32 %v39, %v71
    %v104 = vadd.f32 %v40, %v72
    %v105 = vadd.f32 %v41, %v73
    %v106 = vadd.f32 %v42, %v74
    %v107 = vadd.f32 %v43, %v75
    %v108 = vadd.f32 %v44, %v76
    %v109 = vadd.f32 %v45, %v77
    %v110 = vadd.f32 %v46, %v78
    %v111 = vadd.f32 %v47, %v79
    %v112 = vadd.f32 %v48, %v80
    %v113 = vadd.f32 %v49, %v81
    %v114 = vadd.f32 %v50, %v82
    %v115 = vadd.f32 %v51, %v83
    %v116 = vadd.f32 %v52, %v84
    %v117 = vadd.f32 %v53, %v85
    %v118 = vadd.f32 %v54, %v86
    %v119 = vadd.f32 %v55, %v87
    %v120 = vadd.f32 %v56, %v88
    %v121 = vadd.f32 %v57, %v89
    %v122 = vadd.f32 %v58, %v90
    %v123 = vadd.f32 %v59, %v91
    %v124 = vadd.f32 %v60, %v92
    %v125 = vpack.c.bf16 %v94, %v93
    %v126 = vpack.c.bf16 %v96, %v95
    %v127 = vpack.c.bf16 %v98, %v97
    %v128 = vpack.c.bf16 %v100, %v99
    %v129 = vpack.c.bf16 %v102, %v101
    %v130 = vpack.c.bf16 %v104, %v103
    %v131 = vpack.c.bf16 %v106, %v105
    %v132 = vpack.c.bf16 %v108, %v107
    %v133 = vpack.c.bf16 %v110, %v109
    %v134 = vpack.c.bf16 %v112, %v111
    %v135 = vpack.c.bf16 %v114, %v113
    %v136 = vpack.c.bf16 %v116, %v115
    %v137 = vpack.c.bf16 %v118, %v117
    %v138 = vpack.c.bf16 %v120, %v119
    %v139 = vpack.c.bf16 %v122, %v121
    %v140 = vpack.c.bf16 %v124, %v123
    %v141 = vld [vmem:[#allocation2] sm:$0xff]
    %v142 = vld [vmem:[#allocation2 + $0x8] sm:$0xff]
    %v143 = vld [vmem:[#allocation2 + $0x10] sm:$0xff]
    %v144 = vld [vmem:[#allocation2 + $0x18] sm:$0xff]
    %v145 = vld [vmem:[#allocation2 + $0x20] sm:$0xff]
    %v146 = vld [vmem:[#allocation2 + $0x28] sm:$0xff]
    %v147 = vld [vmem:[#allocation2 + $0x30] sm:$0xff]
    %v148 = vld [vmem:[#allocation2 + $0x38] sm:$0xff]
    %v149 = vld [vmem:[#allocation2 + $0x40] sm:$0xff]
    %v150 = vld [vmem:[#allocation2 + $0x48] sm:$0xff]
    %v151 = vld [vmem:[#allocation2 + $0x50] sm:$0xff]
    %v152 = vld [vmem:[#allocation2 + $0x58] sm:$0xff]
    %v153 = vld [vmem:[#allocation2 + $0x60] sm:$0xff]
    %v154 = vld [vmem:[#allocation2 + $0x68] sm:$0xff]
    %v155 = vld [vmem:[#allocation2 + $0x70] sm:$0xff]
    %v156 = vld [vmem:[#allocation2 + $0x78] sm:$0xff]
    %v157 = vld [vmem:[#allocation2 + $0x80] sm:$0xff]
    %v158 = vld [vmem:[#allocation2 + $0x88] sm:$0xff]
    %v159 = vld [vmem:[#allocation2 + $0x90] sm:$0xff]
    %v160 = vld [vmem:[#allocation2 + $0x98] sm:$0xff]
    %v161 = vld [vmem:[#allocation2 + $0xa0] sm:$0xff]
    %v162 = vld [vmem:[#allocation2 + $0xa8] sm:$0xff]
    %v163 = vld [vmem:[#allocation2 + $0xb0] sm:$0xff]
    %v164 = vld [vmem:[#allocation2 + $0xb8] sm:$0xff]
    %v165 = vld [vmem:[#allocation2 + $0xc0] sm:$0xff]
    %v166 = vld [vmem:[#allocation2 + $0xc8] sm:$0xff]
    %v167 = vld [vmem:[#allocation2 + $0xd0] sm:$0xff]
    %v168 = vld [vmem:[#allocation2 + $0xd8] sm:$0xff]
    %v169 = vld [vmem:[#allocation2 + $0xe0] sm:$0xff]
    %v170 = vld [vmem:[#allocation2 + $0xe8] sm:$0xff]
    %v171 = vld [vmem:[#allocation2 + $0xf0] sm:$0xff]
    %v172 = vld [vmem:[#allocation2 + $0xf8] sm:$0xff]
    %v173 = vld [vmem:[#allocation2 + $0x100] sm:$0xff]
    %v174 = vld [vmem:[#allocation2 + $0x108] sm:$0xff]
    %v175 = vld [vmem:[#allocation2 + $0x110] sm:$0xff]
    %v176 = vld [vmem:[#allocation2 + $0x118] sm:$0xff]
    %v177 = vld [vmem:[#allocation2 + $0x120] sm:$0xff]
    %v178 = vld [vmem:[#allocation2 + $0x128] sm:$0xff]
    %v179 = vld [vmem:[#allocation2 + $0x130] sm:$0xff]
    %v180 = vld [vmem:[#allocation2 + $0x138] sm:$0xff]
    %v181 = vld [vmem:[#allocation2 + $0x140] sm:$0xff]
    %v182 = vld [vmem:[#allocation2 + $0x148] sm:$0xff]
    %v183 = vld [vmem:[#allocation2 + $0x150] sm:$0xff]
    %v184 = vld [vmem:[#allocation2 + $0x158] sm:$0xff]
    %v185 = vld [vmem:[#allocation2 + $0x160] sm:$0xff]
    %v186 = vld [vmem:[#allocation2 + $0x168] sm:$0xff]
    %v187 = vld [vmem:[#allocation2 + $0x170] sm:$0xff]
    %v188 = vld [vmem:[#allocation2 + $0x178] sm:$0xff]
    %v189 = vld [vmem:[#allocation2 + $0x180] sm:$0xff]
    %v190 = vld [vmem:[#allocation2 + $0x188] sm:$0xff]
    %v191 = vld [vmem:[#allocation2 + $0x190] sm:$0xff]
    %v192 = vld [vmem:[#allocation2 + $0x198] sm:$0xff]
    %v193 = vld [vmem:[#allocation2 + $0x1a0] sm:$0xff]
    %v194 = vld [vmem:[#allocation2 + $0x1a8] sm:$0xff]
    %v195 = vld [vmem:[#allocation2 + $0x1b0] sm:$0xff]
    %v196 = vld [vmem:[#allocation2 + $0x1b8] sm:$0xff]
    %v197 = vld [vmem:[#allocation2 + $0x1c0] sm:$0xff]
    %v198 = vld [vmem:[#allocation2 + $0x1c8] sm:$0xff]
    %v199 = vld [vmem:[#allocation2 + $0x1d0] sm:$0xff]
    %v200 = vld [vmem:[#allocation2 + $0x1d8] sm:$0xff]
    %v201 = vld [vmem:[#allocation2 + $0x1e0] sm:$0xff]
    %v202 = vld [vmem:[#allocation2 + $0x1e8] sm:$0xff]
    %v203 = vld [vmem:[#allocation2 + $0x1f0] sm:$0xff]
    %v204 = vld [vmem:[#allocation2 + $0x1f8] sm:$0xff]
    %v205 = vld [vmem:[#allocation2 + $0x200] sm:$0xff]
    %v206 = vld [vmem:[#allocation2 + $0x208] sm:$0xff]
    %v207 = vld [vmem:[#allocation2 + $0x210] sm:$0xff]
    %v208 = vld [vmem:[#allocation2 + $0x218] sm:$0xff]
    %v209 = vld [vmem:[#allocation2 + $0x220] sm:$0xff]
    %v210 = vld [vmem:[#allocation2 + $0x228] sm:$0xff]
    %v211 = vld [vmem:[#allocation2 + $0x230] sm:$0xff]
    %v212 = vld [vmem:[#allocation2 + $0x238] sm:$0xff]
    %v213 = vld [vmem:[#allocation2 + $0x240] sm:$0xff]
    %v214 = vld [vmem:[#allocation2 + $0x248] sm:$0xff]
    %v215 = vld [vmem:[#allocation2 + $0x250] sm:$0xff]
    %v216 = vld [vmem:[#allocation2 + $0x258] sm:$0xff]
    %v217 = vld [vmem:[#allocation2 + $0x260] sm:$0xff]
    %v218 = vld [vmem:[#allocation2 + $0x268] sm:$0xff]
    %v219 = vld [vmem:[#allocation2 + $0x270] sm:$0xff]
    %v220 = vld [vmem:[#allocation2 + $0x278] sm:$0xff]
    %v221 = vld [vmem:[#allocation2 + $0x280] sm:$0xff]
    %v222 = vld [vmem:[#allocation2 + $0x288] sm:$0xff]
    %v223 = vld [vmem:[#allocation2 + $0x290] sm:$0xff]
    %v224 = vld [vmem:[#allocation2 + $0x298] sm:$0xff]
    %v225 = vld [vmem:[#allocation2 + $0x2a0] sm:$0xff]
    %v226 = vld [vmem:[#allocation2 + $0x2a8] sm:$0xff]
    %v227 = vld [vmem:[#allocation2 + $0x2b0] sm:$0xff]
    %v228 = vld [vmem:[#allocation2 + $0x2b8] sm:$0xff]
    %v229 = vld [vmem:[#allocation2 + $0x2c0] sm:$0xff]
    %v230 = vld [vmem:[#allocation2 + $0x2c8] sm:$0xff]
    %v231 = vld [vmem:[#allocation2 + $0x2d0] sm:$0xff]
    %v232 = vld [vmem:[#allocation2 + $0x2d8] sm:$0xff]
    %v233 = vld [vmem:[#allocation2 + $0x2e0] sm:$0xff]
    %v234 = vld [vmem:[#allocation2 + $0x2e8] sm:$0xff]
    %v235 = vld [vmem:[#allocation2 + $0x2f0] sm:$0xff]
    %v236 = vld [vmem:[#allocation2 + $0x2f8] sm:$0xff]
    %v237 = vld [vmem:[#allocation2 + $0x300] sm:$0xff]
    %v238 = vld [vmem:[#allocation2 + $0x308] sm:$0xff]
    %v239 = vld [vmem:[#allocation2 + $0x310] sm:$0xff]
    %v240 = vld [vmem:[#allocation2 + $0x318] sm:$0xff]
    %v241 = vld [vmem:[#allocation2 + $0x320] sm:$0xff]
    %v242 = vld [vmem:[#allocation2 + $0x328] sm:$0xff]
    %v243 = vld [vmem:[#allocation2 + $0x330] sm:$0xff]
    %v244 = vld [vmem:[#allocation2 + $0x338] sm:$0xff]
    %v245 = vld [vmem:[#allocation2 + $0x340] sm:$0xff]
    %v246 = vld [vmem:[#allocation2 + $0x348] sm:$0xff]
    %v247 = vld [vmem:[#allocation2 + $0x350] sm:$0xff]
    %v248 = vld [vmem:[#allocation2 + $0x358] sm:$0xff]
    %v249 = vld [vmem:[#allocation2 + $0x360] sm:$0xff]
    %v250 = vld [vmem:[#allocation2 + $0x368] sm:$0xff]
    %v251 = vld [vmem:[#allocation2 + $0x370] sm:$0xff]
    %v252 = vld [vmem:[#allocation2 + $0x378] sm:$0xff]
    %v253 = vld [vmem:[#allocation2 + $0x380] sm:$0xff]
    %v254 = vld [vmem:[#allocation2 + $0x388] sm:$0xff]
    %v255 = vld [vmem:[#allocation2 + $0x390] sm:$0xff]
    %v256 = vld [vmem:[#allocation2 + $0x398] sm:$0xff]
    %v257 = vld [vmem:[#allocation2 + $0x3a0] sm:$0xff]
    %v258 = vld [vmem:[#allocation2 + $0x3a8] sm:$0xff]
    %v259 = vld [vmem:[#allocation2 + $0x3b0] sm:$0xff]
    %v260 = vld [vmem:[#allocation2 + $0x3b8] sm:$0xff]
    %v261 = vld [vmem:[#allocation2 + $0x3c0] sm:$0xff]
    %v262 = vld [vmem:[#allocation2 + $0x3c8] sm:$0xff]
    %v263 = vld [vmem:[#allocation2 + $0x3d0] sm:$0xff]
    %v264 = vld [vmem:[#allocation2 + $0x3d8] sm:$0xff]
    %v265 = vld [vmem:[#allocation2 + $0x3e0] sm:$0xff]
    %v266 = vld [vmem:[#allocation2 + $0x3e8] sm:$0xff]
    %v267 = vld [vmem:[#allocation2 + $0x3f0] sm:$0xff]
    %v268 = vld [vmem:[#allocation2 + $0x3f8] sm:$0xff]
    %v269 = vld [vmem:[#allocation2 + $0x400] sm:$0xff]
    %v270 = vld [vmem:[#allocation2 + $0x408] sm:$0xff]
    %v271 = vld [vmem:[#allocation2 + $0x410] sm:$0xff]
    %v272 = vld [vmem:[#allocation2 + $0x418] sm:$0xff]
    %v273 = vld [vmem:[#allocation2 + $0x420] sm:$0xff]
    %v274 = vld [vmem:[#allocation2 + $0x428] sm:$0xff]
    %v275 = vld [vmem:[#allocation2 + $0x430] sm:$0xff]
    %v276 = vld [vmem:[#allocation2 + $0x438] sm:$0xff]
    %v277 = vld [vmem:[#allocation2 + $0x440] sm:$0xff]
    %v278 = vld [vmem:[#allocation2 + $0x448] sm:$0xff]
    %v279 = vld [vmem:[#allocation2 + $0x450] sm:$0xff]
    %v280 = vld [vmem:[#allocation2 + $0x458] sm:$0xff]
    %v281 = vld [vmem:[#allocation2 + $0x460] sm:$0xff]
    %v282 = vld [vmem:[#allocation2 + $0x468] sm:$0xff]
    %v283 = vld [vmem:[#allocation2 + $0x470] sm:$0xff]
    %v284 = vld [vmem:[#allocation2 + $0x478] sm:$0xff]
    %v285 = vld [vmem:[#allocation2 + $0x480] sm:$0xff]
    %v286 = vld [vmem:[#allocation2 + $0x488] sm:$0xff]
    %v287 = vld [vmem:[#allocation2 + $0x490] sm:$0xff]
    %v288 = vld [vmem:[#allocation2 + $0x498] sm:$0xff]
    %v289 = vld [vmem:[#allocation2 + $0x4a0] sm:$0xff]
    %v290 = vld [vmem:[#allocation2 + $0x4a8] sm:$0xff]
    %v291 = vld [vmem:[#allocation2 + $0x4b0] sm:$0xff]
    %v292 = vld [vmem:[#allocation2 + $0x4b8] sm:$0xff]
    %v293 = vld [vmem:[#allocation2 + $0x4c0] sm:$0xff]
    %v294 = vld [vmem:[#allocation2 + $0x4c8] sm:$0xff]
    %v295 = vld [vmem:[#allocation2 + $0x4d0] sm:$0xff]
    %v296 = vld [vmem:[#allocation2 + $0x4d8] sm:$0xff]
    %v297 = vld [vmem:[#allocation2 + $0x4e0] sm:$0xff]
    %v298 = vld [vmem:[#allocation2 + $0x4e8] sm:$0xff]
    %v299 = vld [vmem:[#allocation2 + $0x4f0] sm:$0xff]
    %v300 = vld [vmem:[#allocation2 + $0x4f8] sm:$0xff]
    %v301 = vld [vmem:[#allocation2 + $0x500] sm:$0xff]
    %v302 = vld [vmem:[#allocation2 + $0x508] sm:$0xff]
    %v303 = vld [vmem:[#allocation2 + $0x510] sm:$0xff]
    %v304 = vld [vmem:[#allocation2 + $0x518] sm:$0xff]
    %v305 = vld [vmem:[#allocation2 + $0x520] sm:$0xff]
    %v306 = vld [vmem:[#allocation2 + $0x528] sm:$0xff]
    %v307 = vld [vmem:[#allocation2 + $0x530] sm:$0xff]
    %v308 = vld [vmem:[#allocation2 + $0x538] sm:$0xff]
    %v309 = vld [vmem:[#allocation2 + $0x540] sm:$0xff]
    %v310 = vld [vmem:[#allocation2 + $0x548] sm:$0xff]
    %v311 = vld [vmem:[#allocation2 + $0x550] sm:$0xff]
    %v312 = vld [vmem:[#allocation2 + $0x558] sm:$0xff]
    %v313 = vld [vmem:[#allocation2 + $0x560] sm:$0xff]
    %v314 = vld [vmem:[#allocation2 + $0x568] sm:$0xff]
    %v315 = vld [vmem:[#allocation2 + $0x570] sm:$0xff]
    %v316 = vld [vmem:[#allocation2 + $0x578] sm:$0xff]
    %v317 = vld [vmem:[#allocation2 + $0x580] sm:$0xff]
    %v318 = vld [vmem:[#allocation2 + $0x588] sm:$0xff]
    %v319 = vld [vmem:[#allocation2 + $0x590] sm:$0xff]
    %v320 = vld [vmem:[#allocation2 + $0x598] sm:$0xff]
    %v321 = vld [vmem:[#allocation2 + $0x5a0] sm:$0xff]
    %v322 = vld [vmem:[#allocation2 + $0x5a8] sm:$0xff]
    %v323 = vld [vmem:[#allocation2 + $0x5b0] sm:$0xff]
    %v324 = vld [vmem:[#allocation2 + $0x5b8] sm:$0xff]
    %v325 = vld [vmem:[#allocation2 + $0x5c0] sm:$0xff]
    %v326 = vld [vmem:[#allocation2 + $0x5c8] sm:$0xff]
    %v327 = vld [vmem:[#allocation2 + $0x5d0] sm:$0xff]
    %v328 = vld [vmem:[#allocation2 + $0x5d8] sm:$0xff]
    %v329 = vld [vmem:[#allocation2 + $0x5e0] sm:$0xff]
    %v330 = vld [vmem:[#allocation2 + $0x5e8] sm:$0xff]
    %v331 = vld [vmem:[#allocation2 + $0x5f0] sm:$0xff]
    %v332 = vld [vmem:[#allocation2 + $0x5f8] sm:$0xff]
    %v525 = vunpack.c.l.b16 %v141
    %v526 = vunpack.c.h.b16 %v141
    %v527 = vunpack.c.l.b16 %v142
    %v528 = vunpack.c.h.b16 %v142
    %v529 = vunpack.c.l.b16 %v143
    %v530 = vunpack.c.h.b16 %v143
    %v531 = vunpack.c.l.b16 %v144
    %v532 = vunpack.c.h.b16 %v144
    %v533 = vunpack.c.l.b16 %v145
    %v534 = vunpack.c.h.b16 %v145
    %v535 = vunpack.c.l.b16 %v146
    %v536 = vunpack.c.h.b16 %v146
    %v537 = vunpack.c.l.b16 %v147
    %v538 = vunpack.c.h.b16 %v147
    %v539 = vunpack.c.l.b16 %v148
    %v540 = vunpack.c.h.b16 %v148
    %v541 = vunpack.c.l.b16 %v149
    %v542 = vunpack.c.h.b16 %v149
    %v543 = vunpack.c.l.b16 %v150
    %v544 = vunpack.c.h.b16 %v150
    %v545 = vunpack.c.l.b16 %v151
    %v546 = vunpack.c.h.b16 %v151
    %v547 = vunpack.c.l.b16 %v152
    %v548 = vunpack.c.h.b16 %v152
    %v549 = vunpack.c.l.b16 %v153
    %v550 = vunpack.c.h.b16 %v153
    %v551 = vunpack.c.l.b16 %v154
    %v552 = vunpack.c.h.b16 %v154
    %v553 = vunpack.c.l.b16 %v155
    %v554 = vunpack.c.h.b16 %v155
    %v555 = vunpack.c.l.b16 %v156
    %v556 = vunpack.c.h.b16 %v156
    %v557 = vunpack.c.l.b16 %v157
    %v558 = vunpack.c.h.b16 %v157
    %v559 = vunpack.c.l.b16 %v158
    %v560 = vunpack.c.h.b16 %v158
    %v561 = vunpack.c.l.b16 %v159
    %v562 = vunpack.c.h.b16 %v159
    %v563 = vunpack.c.l.b16 %v160
    %v564 = vunpack.c.h.b16 %v160
    %v565 = vunpack.c.l.b16 %v161
    %v566 = vunpack.c.h.b16 %v161
    %v567 = vunpack.c.l.b16 %v162
    %v568 = vunpack.c.h.b16 %v162
    %v569 = vunpack.c.l.b16 %v163
    %v570 = vunpack.c.h.b16 %v163
    %v571 = vunpack.c.l.b16 %v164
    %v572 = vunpack.c.h.b16 %v164
    %v573 = vunpack.c.l.b16 %v165
    %v574 = vunpack.c.h.b16 %v165
    %v575 = vunpack.c.l.b16 %v166
    %v576 = vunpack.c.h.b16 %v166
    %v577 = vunpack.c.l.b16 %v167
    %v578 = vunpack.c.h.b16 %v167
    %v579 = vunpack.c.l.b16 %v168
    %v580 = vunpack.c.h.b16 %v168
    %v581 = vunpack.c.l.b16 %v169
    %v582 = vunpack.c.h.b16 %v169
    %v583 = vunpack.c.l.b16 %v170
    %v584 = vunpack.c.h.b16 %v170
    %v585 = vunpack.c.l.b16 %v171
    %v586 = vunpack.c.h.b16 %v171
    %v587 = vunpack.c.l.b16 %v172
    %v588 = vunpack.c.h.b16 %v172
    %v589 = vunpack.c.l.b16 %v173
    %v590 = vunpack.c.h.b16 %v173
    %v591 = vunpack.c.l.b16 %v174
    %v592 = vunpack.c.h.b16 %v174
    %v593 = vunpack.c.l.b16 %v175
    %v594 = vunpack.c.h.b16 %v175
    %v595 = vunpack.c.l.b16 %v176
    %v596 = vunpack.c.h.b16 %v176
    %v597 = vunpack.c.l.b16 %v177
    %v598 = vunpack.c.h.b16 %v177
    %v599 = vunpack.c.l.b16 %v178
    %v600 = vunpack.c.h.b16 %v178
    %v601 = vunpack.c.l.b16 %v179
    %v602 = vunpack.c.h.b16 %v179
    %v603 = vunpack.c.l.b16 %v180
    %v604 = vunpack.c.h.b16 %v180
    %v605 = vunpack.c.l.b16 %v181
    %v606 = vunpack.c.h.b16 %v181
    %v607 = vunpack.c.l.b16 %v182
    %v608 = vunpack.c.h.b16 %v182
    %v609 = vunpack.c.l.b16 %v183
    %v610 = vunpack.c.h.b16 %v183
    %v611 = vunpack.c.l.b16 %v184
    %v612 = vunpack.c.h.b16 %v184
    %v613 = vunpack.c.l.b16 %v185
    %v614 = vunpack.c.h.b16 %v185
    %v615 = vunpack.c.l.b16 %v186
    %v616 = vunpack.c.h.b16 %v186
    %v617 = vunpack.c.l.b16 %v187
    %v618 = vunpack.c.h.b16 %v187
    %v619 = vunpack.c.l.b16 %v188
    %v620 = vunpack.c.h.b16 %v188
    %v621 = vunpack.c.l.b16 %v189
    %v622 = vunpack.c.h.b16 %v189
    %v623 = vunpack.c.l.b16 %v190
    %v624 = vunpack.c.h.b16 %v190
    %v625 = vunpack.c.l.b16 %v191
    %v626 = vunpack.c.h.b16 %v191
    %v627 = vunpack.c.l.b16 %v192
    %v628 = vunpack.c.h.b16 %v192
    %v629 = vunpack.c.l.b16 %v193
    %v630 = vunpack.c.h.b16 %v193
    %v631 = vunpack.c.l.b16 %v194
    %v632 = vunpack.c.h.b16 %v194
    %v633 = vunpack.c.l.b16 %v195
    %v634 = vunpack.c.h.b16 %v195
    %v635 = vunpack.c.l.b16 %v196
    %v636 = vunpack.c.h.b16 %v196
    %v637 = vunpack.c.l.b16 %v197
    %v638 = vunpack.c.h.b16 %v197
    %v639 = vunpack.c.l.b16 %v198
    %v640 = vunpack.c.h.b16 %v198
    %v641 = vunpack.c.l.b16 %v199
    %v642 = vunpack.c.h.b16 %v199
    %v643 = vunpack.c.l.b16 %v200
    %v644 = vunpack.c.h.b16 %v200
    %v645 = vunpack.c.l.b16 %v201
    %v646 = vunpack.c.h.b16 %v201
    %v647 = vunpack.c.l.b16 %v202
    %v648 = vunpack.c.h.b16 %v202
    %v649 = vunpack.c.l.b16 %v203
    %v650 = vunpack.c.h.b16 %v203
    %v651 = vunpack.c.l.b16 %v204
    %v652 = vunpack.c.h.b16 %v204
    %v653 = vunpack.c.l.b16 %v205
    %v654 = vunpack.c.h.b16 %v205
    %v655 = vunpack.c.l.b16 %v206
    %v656 = vunpack.c.h.b16 %v206
    %v657 = vunpack.c.l.b16 %v207
    %v658 = vunpack.c.h.b16 %v207
    %v659 = vunpack.c.l.b16 %v208
    %v660 = vunpack.c.h.b16 %v208
    %v661 = vunpack.c.l.b16 %v209
    %v662 = vunpack.c.h.b16 %v209
    %v663 = vunpack.c.l.b16 %v210
    %v664 = vunpack.c.h.b16 %v210
    %v665 = vunpack.c.l.b16 %v211
    %v666 = vunpack.c.h.b16 %v211
    %v667 = vunpack.c.l.b16 %v212
    %v668 = vunpack.c.h.b16 %v212
    %v669 = vunpack.c.l.b16 %v213
    %v670 = vunpack.c.h.b16 %v213
    %v671 = vunpack.c.l.b16 %v214
    %v672 = vunpack.c.h.b16 %v214
    %v673 = vunpack.c.l.b16 %v215
    %v674 = vunpack.c.h.b16 %v215
    %v675 = vunpack.c.l.b16 %v216
    %v676 = vunpack.c.h.b16 %v216
    %v677 = vunpack.c.l.b16 %v217
    %v678 = vunpack.c.h.b16 %v217
    %v679 = vunpack.c.l.b16 %v218
    %v680 = vunpack.c.h.b16 %v218
    %v681 = vunpack.c.l.b16 %v219
    %v682 = vunpack.c.h.b16 %v219
    %v683 = vunpack.c.l.b16 %v220
    %v684 = vunpack.c.h.b16 %v220
    %v685 = vunpack.c.l.b16 %v221
    %v686 = vunpack.c.h.b16 %v221
    %v687 = vunpack.c.l.b16 %v222
    %v688 = vunpack.c.h.b16 %v222
    %v689 = vunpack.c.l.b16 %v223
    %v690 = vunpack.c.h.b16 %v223
    %v691 = vunpack.c.l.b16 %v224
    %v692 = vunpack.c.h.b16 %v224
    %v693 = vunpack.c.l.b16 %v225
    %v694 = vunpack.c.h.b16 %v225
    %v695 = vunpack.c.l.b16 %v226
    %v696 = vunpack.c.h.b16 %v226
    %v697 = vunpack.c.l.b16 %v227
    %v698 = vunpack.c.h.b16 %v227
    %v699 = vunpack.c.l.b16 %v228
    %v700 = vunpack.c.h.b16 %v228
    %v701 = vunpack.c.l.b16 %v229
    %v702 = vunpack.c.h.b16 %v229
    %v703 = vunpack.c.l.b16 %v230
    %v704 = vunpack.c.h.b16 %v230
    %v705 = vunpack.c.l.b16 %v231
    %v706 = vunpack.c.h.b16 %v231
    %v707 = vunpack.c.l.b16 %v232
    %v708 = vunpack.c.h.b16 %v232
    %v709 = vunpack.c.l.b16 %v233
    %v710 = vunpack.c.h.b16 %v233
    %v711 = vunpack.c.l.b16 %v234
    %v712 = vunpack.c.h.b16 %v234
    %v713 = vunpack.c.l.b16 %v235
    %v714 = vunpack.c.h.b16 %v235
    %v715 = vunpack.c.l.b16 %v236
    %v716 = vunpack.c.h.b16 %v236
    %v717 = vunpack.c.l.b16 %v237
    %v718 = vunpack.c.h.b16 %v237
    %v719 = vunpack.c.l.b16 %v238
    %v720 = vunpack.c.h.b16 %v238
    %v721 = vunpack.c.l.b16 %v239
    %v722 = vunpack.c.h.b16 %v239
    %v723 = vunpack.c.l.b16 %v240
    %v724 = vunpack.c.h.b16 %v240
    %v725 = vunpack.c.l.b16 %v241
    %v726 = vunpack.c.h.b16 %v241
    %v727 = vunpack.c.l.b16 %v242
    %v728 = vunpack.c.h.b16 %v242
    %v729 = vunpack.c.l.b16 %v243
    %v730 = vunpack.c.h.b16 %v243
    %v731 = vunpack.c.l.b16 %v244
    %v732 = vunpack.c.h.b16 %v244
    %v733 = vunpack.c.l.b16 %v245
    %v734 = vunpack.c.h.b16 %v245
    %v735 = vunpack.c.l.b16 %v246
    %v736 = vunpack.c.h.b16 %v246
    %v737 = vunpack.c.l.b16 %v247
    %v738 = vunpack.c.h.b16 %v247
    %v739 = vunpack.c.l.b16 %v248
    %v740 = vunpack.c.h.b16 %v248
    %v741 = vunpack.c.l.b16 %v249
    %v742 = vunpack.c.h.b16 %v249
    %v743 = vunpack.c.l.b16 %v250
    %v744 = vunpack.c.h.b16 %v250
    %v745 = vunpack.c.l.b16 %v251
    %v746 = vunpack.c.h.b16 %v251
    %v747 = vunpack.c.l.b16 %v252
    %v748 = vunpack.c.h.b16 %v252
    %v749 = vunpack.c.l.b16 %v253
    %v750 = vunpack.c.h.b16 %v253
    %v751 = vunpack.c.l.b16 %v254
    %v752 = vunpack.c.h.b16 %v254
    %v753 = vunpack.c.l.b16 %v255
    %v754 = vunpack.c.h.b16 %v255
    %v755 = vunpack.c.l.b16 %v256
    %v756 = vunpack.c.h.b16 %v256
    %v757 = vunpack.c.l.b16 %v257
    %v758 = vunpack.c.h.b16 %v257
    %v759 = vunpack.c.l.b16 %v258
    %v760 = vunpack.c.h.b16 %v258
    %v761 = vunpack.c.l.b16 %v259
    %v762 = vunpack.c.h.b16 %v259
    %v763 = vunpack.c.l.b16 %v260
    %v764 = vunpack.c.h.b16 %v260
    %v765 = vunpack.c.l.b16 %v261
    %v766 = vunpack.c.h.b16 %v261
    %v767 = vunpack.c.l.b16 %v262
    %v768 = vunpack.c.h.b16 %v262
    %v769 = vunpack.c.l.b16 %v263
    %v770 = vunpack.c.h.b16 %v263
    %v771 = vunpack.c.l.b16 %v264
    %v772 = vunpack.c.h.b16 %v264
    %v773 = vunpack.c.l.b16 %v265
    %v774 = vunpack.c.h.b16 %v265
    %v775 = vunpack.c.l.b16 %v266
    %v776 = vunpack.c.h.b16 %v266
    %v777 = vunpack.c.l.b16 %v267
    %v778 = vunpack.c.h.b16 %v267
    %v779 = vunpack.c.l.b16 %v268
    %v780 = vunpack.c.h.b16 %v268
    %v781 = vunpack.c.l.b16 %v269
    %v782 = vunpack.c.h.b16 %v269
    %v783 = vunpack.c.l.b16 %v270
    %v784 = vunpack.c.h.b16 %v270
    %v785 = vunpack.c.l.b16 %v271
    %v786 = vunpack.c.h.b16 %v271
    %v787 = vunpack.c.l.b16 %v272
    %v788 = vunpack.c.h.b16 %v272
    %v789 = vunpack.c.l.b16 %v273
    %v790 = vunpack.c.h.b16 %v273
    %v791 = vunpack.c.l.b16 %v274
    %v792 = vunpack.c.h.b16 %v274
    %v793 = vunpack.c.l.b16 %v275
    %v794 = vunpack.c.h.b16 %v275
    %v795 = vunpack.c.l.b16 %v276
    %v796 = vunpack.c.h.b16 %v276
    %v797 = vunpack.c.l.b16 %v277
    %v798 = vunpack.c.h.b16 %v277
    %v799 = vunpack.c.l.b16 %v278
    %v800 = vunpack.c.h.b16 %v278
    %v801 = vunpack.c.l.b16 %v279
    %v802 = vunpack.c.h.b16 %v279
    %v803 = vunpack.c.l.b16 %v280
    %v804 = vunpack.c.h.b16 %v280
    %v805 = vunpack.c.l.b16 %v281
    %v806 = vunpack.c.h.b16 %v281
    %v807 = vunpack.c.l.b16 %v282
    %v808 = vunpack.c.h.b16 %v282
    %v809 = vunpack.c.l.b16 %v283
    %v810 = vunpack.c.h.b16 %v283
    %v811 = vunpack.c.l.b16 %v284
    %v812 = vunpack.c.h.b16 %v284
    %v813 = vunpack.c.l.b16 %v285
    %v814 = vunpack.c.h.b16 %v285
    %v815 = vunpack.c.l.b16 %v286
    %v816 = vunpack.c.h.b16 %v286
    %v817 = vunpack.c.l.b16 %v287
    %v818 = vunpack.c.h.b16 %v287
    %v819 = vunpack.c.l.b16 %v288
    %v820 = vunpack.c.h.b16 %v288
    %v821 = vunpack.c.l.b16 %v289
    %v822 = vunpack.c.h.b16 %v289
    %v823 = vunpack.c.l.b16 %v290
    %v824 = vunpack.c.h.b16 %v290
    %v825 = vunpack.c.l.b16 %v291
    %v826 = vunpack.c.h.b16 %v291
    %v827 = vunpack.c.l.b16 %v292
    %v828 = vunpack.c.h.b16 %v292
    %v829 = vunpack.c.l.b16 %v293
    %v830 = vunpack.c.h.b16 %v293
    %v831 = vunpack.c.l.b16 %v294
    %v832 = vunpack.c.h.b16 %v294
    %v833 = vunpack.c.l.b16 %v295
    %v834 = vunpack.c.h.b16 %v295
    %v835 = vunpack.c.l.b16 %v296
    %v836 = vunpack.c.h.b16 %v296
    %v837 = vunpack.c.l.b16 %v297
    %v838 = vunpack.c.h.b16 %v297
    %v839 = vunpack.c.l.b16 %v298
    %v840 = vunpack.c.h.b16 %v298
    %v841 = vunpack.c.l.b16 %v299
    %v842 = vunpack.c.h.b16 %v299
    %v843 = vunpack.c.l.b16 %v300
    %v844 = vunpack.c.h.b16 %v300
    %v845 = vunpack.c.l.b16 %v301
    %v846 = vunpack.c.h.b16 %v301
    %v847 = vunpack.c.l.b16 %v302
    %v848 = vunpack.c.h.b16 %v302
    %v849 = vunpack.c.l.b16 %v303
    %v850 = vunpack.c.h.b16 %v303
    %v851 = vunpack.c.l.b16 %v304
    %v852 = vunpack.c.h.b16 %v304
    %v853 = vunpack.c.l.b16 %v305
    %v854 = vunpack.c.h.b16 %v305
    %v855 = vunpack.c.l.b16 %v306
    %v856 = vunpack.c.h.b16 %v306
    %v857 = vunpack.c.l.b16 %v307
    %v858 = vunpack.c.h.b16 %v307
    %v859 = vunpack.c.l.b16 %v308
    %v860 = vunpack.c.h.b16 %v308
    %v861 = vunpack.c.l.b16 %v309
    %v862 = vunpack.c.h.b16 %v309
    %v863 = vunpack.c.l.b16 %v310
    %v864 = vunpack.c.h.b16 %v310
    %v865 = vunpack.c.l.b16 %v311
    %v866 = vunpack.c.h.b16 %v311
    %v867 = vunpack.c.l.b16 %v312
    %v868 = vunpack.c.h.b16 %v312
    %v869 = vunpack.c.l.b16 %v313
    %v870 = vunpack.c.h.b16 %v313
    %v871 = vunpack.c.l.b16 %v314
    %v872 = vunpack.c.h.b16 %v314
    %v873 = vunpack.c.l.b16 %v315
    %v874 = vunpack.c.h.b16 %v315
    %v875 = vunpack.c.l.b16 %v316
    %v876 = vunpack.c.h.b16 %v316
    %v877 = vunpack.c.l.b16 %v317
    %v878 = vunpack.c.h.b16 %v317
    %v879 = vunpack.c.l.b16 %v318
    %v880 = vunpack.c.h.b16 %v318
    %v881 = vunpack.c.l.b16 %v319
    %v882 = vunpack.c.h.b16 %v319
    %v883 = vunpack.c.l.b16 %v320
    %v884 = vunpack.c.h.b16 %v320
    %v885 = vunpack.c.l.b16 %v321
    %v886 = vunpack.c.h.b16 %v321
    %v887 = vunpack.c.l.b16 %v322
    %v888 = vunpack.c.h.b16 %v322
    %v889 = vunpack.c.l.b16 %v323
    %v890 = vunpack.c.h.b16 %v323
    %v891 = vunpack.c.l.b16 %v324
    %v892 = vunpack.c.h.b16 %v324
    %v893 = vunpack.c.l.b16 %v325
    %v894 = vunpack.c.h.b16 %v325
    %v895 = vunpack.c.l.b16 %v326
    %v896 = vunpack.c.h.b16 %v326
    %v897 = vunpack.c.l.b16 %v327
    %v898 = vunpack.c.h.b16 %v327
    %v899 = vunpack.c.l.b16 %v328
    %v900 = vunpack.c.h.b16 %v328
    %v901 = vunpack.c.l.b16 %v329
    %v902 = vunpack.c.h.b16 %v329
    %v903 = vunpack.c.l.b16 %v330
    %v904 = vunpack.c.h.b16 %v330
    %v905 = vunpack.c.l.b16 %v331
    %v906 = vunpack.c.h.b16 %v331
    %v907 = vunpack.c.l.b16 %v332
    %v908 = vunpack.c.h.b16 %v332
    %v909 = vpack.c.b16 %v527, %v525
    %v910 = vpack.c.b16 %v528, %v526
    %v911 = vpack.c.b16 %v531, %v529
    %v912 = vpack.c.b16 %v532, %v530
    %v913 = vpack.c.b16 %v535, %v533
    %v914 = vpack.c.b16 %v536, %v534
    %v915 = vpack.c.b16 %v539, %v537
    %v916 = vpack.c.b16 %v540, %v538
    %v917 = vpack.c.b16 %v543, %v541
    %v918 = vpack.c.b16 %v544, %v542
    %v919 = vpack.c.b16 %v547, %v545
    %v920 = vpack.c.b16 %v548, %v546
    %v921 = vpack.c.b16 %v551, %v549
    %v922 = vpack.c.b16 %v552, %v550
    %v923 = vpack.c.b16 %v555, %v553
    %v924 = vpack.c.b16 %v556, %v554
    %v925 = vpack.c.b16 %v559, %v557
    %v926 = vpack.c.b16 %v560, %v558
    %v927 = vpack.c.b16 %v563, %v561
    %v928 = vpack.c.b16 %v564, %v562
    %v929 = vpack.c.b16 %v567, %v565
    %v930 = vpack.c.b16 %v568, %v566
    %v931 = vpack.c.b16 %v571, %v569
    %v932 = vpack.c.b16 %v572, %v570
    %v933 = vpack.c.b16 %v575, %v573
    %v934 = vpack.c.b16 %v576, %v574
    %v935 = vpack.c.b16 %v579, %v577
    %v936 = vpack.c.b16 %v580, %v578
    %v937 = vpack.c.b16 %v583, %v581
    %v938 = vpack.c.b16 %v584, %v582
    %v939 = vpack.c.b16 %v587, %v585
    %v940 = vpack.c.b16 %v588, %v586
    %v941 = vpack.c.b16 %v591, %v589
    %v942 = vpack.c.b16 %v592, %v590
    %v943 = vpack.c.b16 %v595, %v593
    %v944 = vpack.c.b16 %v596, %v594
    %v945 = vpack.c.b16 %v599, %v597
    %v946 = vpack.c.b16 %v600, %v598
    %v947 = vpack.c.b16 %v603, %v601
    %v948 = vpack.c.b16 %v604, %v602
    %v949 = vpack.c.b16 %v607, %v605
    %v950 = vpack.c.b16 %v608, %v606
    %v951 = vpack.c.b16 %v611, %v609
    %v952 = vpack.c.b16 %v612, %v610
    %v953 = vpack.c.b16 %v615, %v613
    %v954 = vpack.c.b16 %v616, %v614
    %v955 = vpack.c.b16 %v619, %v617
    %v956 = vpack.c.b16 %v620, %v618
    %v957 = vpack.c.b16 %v623, %v621
    %v958 = vpack.c.b16 %v624, %v622
    %v959 = vpack.c.b16 %v627, %v625
    %v960 = vpack.c.b16 %v628, %v626
    %v961 = vpack.c.b16 %v631, %v629
    %v962 = vpack.c.b16 %v632, %v630
    %v963 = vpack.c.b16 %v635, %v633
    %v964 = vpack.c.b16 %v636, %v634
    %v965 = vpack.c.b16 %v639, %v637
    %v966 = vpack.c.b16 %v640, %v638
    %v967 = vpack.c.b16 %v643, %v641
    %v968 = vpack.c.b16 %v644, %v642
    %v969 = vpack.c.b16 %v647, %v645
    %v970 = vpack.c.b16 %v648, %v646
    %v971 = vpack.c.b16 %v651, %v649
    %v972 = vpack.c.b16 %v652, %v650
    %v973 = vpack.c.b16 %v655, %v653
    %v974 = vpack.c.b16 %v656, %v654
    %v975 = vpack.c.b16 %v659, %v657
    %v976 = vpack.c.b16 %v660, %v658
    %v977 = vpack.c.b16 %v663, %v661
    %v978 = vpack.c.b16 %v664, %v662
    %v979 = vpack.c.b16 %v667, %v665
    %v980 = vpack.c.b16 %v668, %v666
    %v981 = vpack.c.b16 %v671, %v669
    %v982 = vpack.c.b16 %v672, %v670
    %v983 = vpack.c.b16 %v675, %v673
    %v984 = vpack.c.b16 %v676, %v674
    %v985 = vpack.c.b16 %v679, %v677
    %v986 = vpack.c.b16 %v680, %v678
    %v987 = vpack.c.b16 %v683, %v681
    %v988 = vpack.c.b16 %v684, %v682
    %v989 = vpack.c.b16 %v687, %v685
    %v990 = vpack.c.b16 %v688, %v686
    %v991 = vpack.c.b16 %v691, %v689
    %v992 = vpack.c.b16 %v692, %v690
    %v993 = vpack.c.b16 %v695, %v693
    %v994 = vpack.c.b16 %v696, %v694
    %v995 = vpack.c.b16 %v699, %v697
    %v996 = vpack.c.b16 %v700, %v698
    %v997 = vpack.c.b16 %v703, %v701
    %v998 = vpack.c.b16 %v704, %v702
    %v999 = vpack.c.b16 %v707, %v705
    %v1000 = vpack.c.b16 %v708, %v706
    %v1001 = vpack.c.b16 %v711, %v709
    %v1002 = vpack.c.b16 %v712, %v710
    %v1003 = vpack.c.b16 %v715, %v713
    %v1004 = vpack.c.b16 %v716, %v714
    %v1005 = vpack.c.b16 %v719, %v717
    %v1006 = vpack.c.b16 %v720, %v718
    %v1007 = vpack.c.b16 %v723, %v721
    %v1008 = vpack.c.b16 %v724, %v722
    %v1009 = vpack.c.b16 %v727, %v725
    %v1010 = vpack.c.b16 %v728, %v726
    %v1011 = vpack.c.b16 %v731, %v729
    %v1012 = vpack.c.b16 %v732, %v730
    %v1013 = vpack.c.b16 %v735, %v733
    %v1014 = vpack.c.b16 %v736, %v734
    %v1015 = vpack.c.b16 %v739, %v737
    %v1016 = vpack.c.b16 %v740, %v738
    %v1017 = vpack.c.b16 %v743, %v741
    %v1018 = vpack.c.b16 %v744, %v742
    %v1019 = vpack.c.b16 %v747, %v745
    %v1020 = vpack.c.b16 %v748, %v746
    %v1021 = vpack.c.b16 %v751, %v749
    %v1022 = vpack.c.b16 %v752, %v750
    %v1023 = vpack.c.b16 %v755, %v753
    %v1024 = vpack.c.b16 %v756, %v754
    %v1025 = vpack.c.b16 %v759, %v757
    %v1026 = vpack.c.b16 %v760, %v758
    %v1027 = vpack.c.b16 %v763, %v761
    %v1028 = vpack.c.b16 %v764, %v762
    %v1029 = vpack.c.b16 %v767, %v765
    %v1030 = vpack.c.b16 %v768, %v766
    %v1031 = vpack.c.b16 %v771, %v769
    %v1032 = vpack.c.b16 %v772, %v770
    %v1033 = vpack.c.b16 %v775, %v773
    %v1034 = vpack.c.b16 %v776, %v774
    %v1035 = vpack.c.b16 %v779, %v777
    %v1036 = vpack.c.b16 %v780, %v778
    %v1037 = vpack.c.b16 %v783, %v781
    %v1038 = vpack.c.b16 %v784, %v782
    %v1039 = vpack.c.b16 %v787, %v785
    %v1040 = vpack.c.b16 %v788, %v786
    %v1041 = vpack.c.b16 %v791, %v789
    %v1042 = vpack.c.b16 %v792, %v790
    %v1043 = vpack.c.b16 %v795, %v793
    %v1044 = vpack.c.b16 %v796, %v794
    %v1045 = vpack.c.b16 %v799, %v797
    %v1046 = vpack.c.b16 %v800, %v798
    %v1047 = vpack.c.b16 %v803, %v801
    %v1048 = vpack.c.b16 %v804, %v802
    %v1049 = vpack.c.b16 %v807, %v805
    %v1050 = vpack.c.b16 %v808, %v806
    %v1051 = vpack.c.b16 %v811, %v809
    %v1052 = vpack.c.b16 %v812, %v810
    %v1053 = vpack.c.b16 %v815, %v813
    %v1054 = vpack.c.b16 %v816, %v814
    %v1055 = vpack.c.b16 %v819, %v817
    %v1056 = vpack.c.b16 %v820, %v818
    %v1057 = vpack.c.b16 %v823, %v821
    %v1058 = vpack.c.b16 %v824, %v822
    %v1059 = vpack.c.b16 %v827, %v825
    %v1060 = vpack.c.b16 %v828, %v826
    %v1061 = vpack.c.b16 %v831, %v829
    %v1062 = vpack.c.b16 %v832, %v830
    %v1063 = vpack.c.b16 %v835, %v833
    %v1064 = vpack.c.b16 %v836, %v834
    %v1065 = vpack.c.b16 %v839, %v837
    %v1066 = vpack.c.b16 %v840, %v838
    %v1067 = vpack.c.b16 %v843, %v841
    %v1068 = vpack.c.b16 %v844, %v842
    %v1069 = vpack.c.b16 %v847, %v845
    %v1070 = vpack.c.b16 %v848, %v846
    %v1071 = vpack.c.b16 %v851, %v849
    %v1072 = vpack.c.b16 %v852, %v850
    %v1073 = vpack.c.b16 %v855, %v853
    %v1074 = vpack.c.b16 %v856, %v854
    %v1075 = vpack.c.b16 %v859, %v857
    %v1076 = vpack.c.b16 %v860, %v858
    %v1077 = vpack.c.b16 %v863, %v861
    %v1078 = vpack.c.b16 %v864, %v862
    %v1079 = vpack.c.b16 %v867, %v865
    %v1080 = vpack.c.b16 %v868, %v866
    %v1081 = vpack.c.b16 %v871, %v869
    %v1082 = vpack.c.b16 %v872, %v870
    %v1083 = vpack.c.b16 %v875, %v873
    %v1084 = vpack.c.b16 %v876, %v874
    %v1085 = vpack.c.b16 %v879, %v877
    %v1086 = vpack.c.b16 %v880, %v878
    %v1087 = vpack.c.b16 %v883, %v881
    %v1088 = vpack.c.b16 %v884, %v882
    %v1089 = vpack.c.b16 %v887, %v885
    %v1090 = vpack.c.b16 %v888, %v886
    %v1091 = vpack.c.b16 %v891, %v889
    %v1092 = vpack.c.b16 %v892, %v890
    %v1093 = vpack.c.b16 %v895, %v893
    %v1094 = vpack.c.b16 %v896, %v894
    %v1095 = vpack.c.b16 %v899, %v897
    %v1096 = vpack.c.b16 %v900, %v898
    %v1097 = vpack.c.b16 %v903, %v901
    %v1098 = vpack.c.b16 %v904, %v902
    %v1099 = vpack.c.b16 %v907, %v905
    %v1100 = vpack.c.b16 %v908, %v906
    %1293 = vmatprep.subr.bf16.mxu0 0
    %1294 = vmatpush1.bf16.msra.mxu0 %v125
    %1295 = vmatprep.subr.bf16.mxu0 0
    %1296 = vmatpush1.bf16.msra.mxu0 %v126
    %1297 = vmatprep.subr.bf16.mxu0 0
    %1298 = vmatpush1.bf16.msra.mxu0 %v127
    %1299 = vmatprep.subr.bf16.mxu0 0
    %1300 = vmatpush1.bf16.msra.mxu0 %v128
    %1301 = vmatprep.subr.bf16.mxu0 0
    %1302 = vmatpush1.bf16.msra.mxu0 %v129
    %1303 = vmatprep.subr.bf16.mxu0 0
    %1304 = vmatpush1.bf16.msra.mxu0 %v130
    %1305 = vmatprep.subr.bf16.mxu0 0
    %1306 = vmatpush1.bf16.msra.mxu0 %v131
    %1307 = vmatprep.subr.bf16.mxu0 0
    %1308 = vmatpush1.bf16.msra.mxu0 %v132
    %1309 = vmatprep.subr.bf16.mxu0 0
    %1310 = vmatpush1.bf16.msra.mxu0 %v133
    %1311 = vmatprep.subr.bf16.mxu0 0
    %1312 = vmatpush1.bf16.msra.mxu0 %v134
    %1313 = vmatprep.subr.bf16.mxu0 0
    %1314 = vmatpush1.bf16.msra.mxu0 %v135
    %1315 = vmatprep.subr.bf16.mxu0 0
    %1316 = vmatpush1.bf16.msra.mxu0 %v136
    %1317 = vmatprep.subr.bf16.mxu0 0
    %1318 = vmatpush1.bf16.msra.mxu0 %v137
    %1319 = vmatprep.subr.bf16.mxu0 0
    %1320 = vmatpush1.bf16.msra.mxu0 %v138
    %1321 = vmatprep.subr.bf16.mxu0 0
    %1322 = vmatpush1.bf16.msra.mxu0 %v139
    %1323 = vmatprep.subr.bf16.mxu0 0
    %1324 = vmatpush1.bf16.msra.mxu0 %v140
    %1325 = vmatprep.mubr.bf16.mxu0 %v910
    %1326 = vmatmul.mubr.bf16.gmra.mrb[0].mxu0 %v909
    %v1327 = vpop.f32.mrb[0].mxu0
    %v1328 = vadd.f32 0.0, %v1327
    %v1329 = vpop.f32.mrb[0].mxu0
    %v1330 = vpop.f32.mrb[0].mxu0
    %v1331 = vadd.f32 0.0, %v1330
    %v1332 = vpop.f32.mrb[0].mxu0
    %1333 = vmatprep.mubr.bf16.mxu0 %v912
    %1334 = vmatmul.mubr.bf16.gmra.mrb[0].mxu0 %v911
    %v1335 = vpop.f32.mrb[0].mxu0
    %v1336 = vadd.f32 0.0, %v1335
    %v1337 = vpop.f32.mrb[0].mxu0
    %v1338 = vpop.f32.mrb[0].mxu0
    %v1339 = vadd.f32 0.0, %v1338
    %v1340 = vpop.f32.mrb[0].mxu0
    %1341 = vmatprep.mubr.bf16.mxu0 %v914
    %1342 = vmatmul.mubr.bf16.gmra.mrb[0].mxu0 %v913
    %v1343 = vpop.f32.mrb[0].mxu0
    %v1344 = vadd.f32 0.0, %v1343
    %v1345 = vpop.f32.mrb[0].mxu0
    %v1346 = vpop.f32.mrb[0].mxu0
    %v1347 = vadd.f32 0.0, %v1346
    %v1348 = vpop.f32.mrb[0].mxu0
    %1349 = vmatprep.mubr.bf16.mxu0 %v916
    %1350 = vmatmul.mubr.bf16.gmra.mrb[0].mxu0 %v915
    %v1351 = vpop.f32.mrb[0].mxu0
    %v1352 = vadd.f32 0.0, %v1351
    %v1353 = vpop.f32.mrb[0].mxu0
    %v1354 = vpop.f32.mrb[0].mxu0
    %v1355 = vadd.f32 0.0, %v1354
    %v1356 = vpop.f32.mrb[0].mxu0
    %1357 = vmatprep.mubr.bf16.mxu0 %v918
    %1358 = vmatmul.mubr.bf16.gmra.mrb[0].mxu0 %v917
    %v1359 = vpop.f32.mrb[0].mxu0
    %v1360 = vadd.f32 0.0, %v1359
    %v1361 = vpop.f32.mrb[0].mxu0
    %v1362 = vpop.f32.mrb[0].mxu0
    %v1363 = vadd.f32 0.0, %v1362
    %v1364 = vpop.f32.mrb[0].mxu0
    %1365 = vmatprep.mubr.bf16.mxu0 %v920
    %1366 = vmatmul.mubr.bf16.gmra.mrb[0].mxu0 %v919
    %v1367 = vpop.f32.mrb[0].mxu0
    %v1368 = vadd.f32 0.0, %v1367
    %v1369 = vpop.f32.mrb[0].mxu0
    %v1370 = vpop.f32.mrb[0].mxu0
    %v1371 = vadd.f32 0.0, %v1370
    %v1372 = vpop.f32.mrb[0].mxu0
    %1373 = vmatprep.mubr.bf16.mxu0 %v922
    %1374 = vmatmul.mubr.bf16.gmra.mrb[0].mxu0 %v921
    %v1375 = vpop.f32.mrb[0].mxu0
    %v1376 = vadd.f32 0.0, %v1375
    %v1377 = vpop.f32.mrb[0].mxu0
    %v1378 = vpop.f32.mrb[0].mxu0
    %v1379 = vadd.f32 0.0, %v1378
    %v1380 = vpop.f32.mrb[0].mxu0
    %1381 = vmatprep.mubr.bf16.mxu0 %v924
    %1382 = vmatmul.mubr.bf16.gmra.mrb[0].mxu0 %v923
    %v1383 = vpop.f32.mrb[0].mxu0
    %v1384 = vadd.f32 0.0, %v1383
    %v1385 = vpop.f32.mrb[0].mxu0
    %v1386 = vpop.f32.mrb[0].mxu0
    %v1387 = vadd.f32 0.0, %v1386
    %v1388 = vpop.f32.mrb[0].mxu0
    %1389 = vmatprep.mubr.bf16.mxu0 %v926
    %1390 = vmatmul.mubr.bf16.gmra.mrb[0].mxu0 %v925
    %v1391 = vpop.f32.mrb[0].mxu0
    %v1392 = vadd.f32 0.0, %v1391
    %v1393 = vpop.f32.mrb[0].mxu0
    %v1394 = vpop.f32.mrb[0].mxu0
    %v1395 = vadd.f32 0.0, %v1394
    %v1396 = vpop.f32.mrb[0].mxu0
    %1397 = vmatprep.mubr.bf16.mxu0 %v928
    %1398 = vmatmul.mubr.bf16.gmra.mrb[0].mxu0 %v927
    %v1399 = vpop.f32.mrb[0].mxu0
    %v1400 = vadd.f32 0.0, %v1399
    %v1401 = vpop.f32.mrb[0].mxu0
    %v1402 = vpop.f32.mrb[0].mxu0
    %v1403 = vadd.f32 0.0, %v1402
    %v1404 = vpop.f32.mrb[0].mxu0
    %1405 = vmatprep.mubr.bf16.mxu0 %v930
    %1406 = vmatmul.mubr.bf16.gmra.mrb[0].mxu0 %v929
    %v1407 = vpop.f32.mrb[0].mxu0
    %v1408 = vadd.f32 0.0, %v1407
    %v1409 = vpop.f32.mrb[0].mxu0
    %v1410 = vpop.f32.mrb[0].mxu0
    %v1411 = vadd.f32 0.0, %v1410
    %v1412 = vpop.f32.mrb[0].mxu0
    %1413 = vmatprep.mubr.bf16.mxu0 %v932
    %1414 = vmatmul.mubr.bf16.gmra.mrb[0].mxu0 %v931
    %v1415 = vpop.f32.mrb[0].mxu0
    %v1416 = vadd.f32 0.0, %v1415
    %v1417 = vpop.f32.mrb[0].mxu0
    %v1418 = vpop.f32.mrb[0].mxu0
    %v1419 = vadd.f32 0.0, %v1418
    %v1420 = vpop.f32.mrb[0].mxu0
    %1421 = vmatprep.mubr.bf16.mxu0 %v934
    %1422 = vmatmul.mubr.bf16.gmra.mrb[0].mxu0 %v933
    %v1423 = vpop.f32.mrb[0].mxu0
    %v1424 = vadd.f32 0.0, %v1423
    %v1425 = vpop.f32.mrb[0].mxu0
    %v1426 = vpop.f32.mrb[0].mxu0
    %v1427 = vadd.f32 0.0, %v1426
    %v1428 = vpop.f32.mrb[0].mxu0
    %1429 = vmatprep.mubr.bf16.mxu0 %v936
    %1430 = vmatmul.mubr.bf16.gmra.mrb[0].mxu0 %v935
    %v1431 = vpop.f32.mrb[0].mxu0
    %v1432 = vadd.f32 0.0, %v1431
    %v1433 = vpop.f32.mrb[0].mxu0
    %v1434 = vpop.f32.mrb[0].mxu0
    %v1435 = vadd.f32 0.0, %v1434
    %v1436 = vpop.f32.mrb[0].mxu0
    %1437 = vmatprep.mubr.bf16.mxu0 %v938
    %1438 = vmatmul.mubr.bf16.gmra.mrb[0].mxu0 %v937
    %v1439 = vpop.f32.mrb[0].mxu0
    %v1440 = vadd.f32 0.0, %v1439
    %v1441 = vpop.f32.mrb[0].mxu0
    %v1442 = vpop.f32.mrb[0].mxu0
    %v1443 = vadd.f32 0.0, %v1442
    %v1444 = vpop.f32.mrb[0].mxu0
    %1445 = vmatprep.mubr.bf16.mxu0 %v940
    %1446 = vmatmul.mubr.bf16.gmra.mrb[0].mxu0 %v939
    %v1447 = vpop.f32.mrb[0].mxu0
    %v1448 = vadd.f32 0.0, %v1447
    %v1449 = vpop.f32.mrb[0].mxu0
    %v1450 = vpop.f32.mrb[0].mxu0
    %v1451 = vadd.f32 0.0, %v1450
    %v1452 = vpop.f32.mrb[0].mxu0
    %1453 = vmatprep.mubr.bf16.mxu0 %v942
    %1454 = vmatmul.mubr.bf16.gmra.mrb[0].mxu0 %v941
    %v1455 = vpop.f32.mrb[0].mxu0
    %v1456 = vadd.f32 0.0, %v1455
    %v1457 = vpop.f32.mrb[0].mxu0
    %v1458 = vpop.f32.mrb[0].mxu0
    %v1459 = vadd.f32 0.0, %v1458
    %v1460 = vpop.f32.mrb[0].mxu0
    %1461 = vmatprep.mubr.bf16.mxu0 %v944
    %1462 = vmatmul.mubr.bf16.gmra.mrb[0].mxu0 %v943
    %v1463 = vpop.f32.mrb[0].mxu0
    %v1464 = vadd.f32 0.0, %v1463
    %v1465 = vpop.f32.mrb[0].mxu0
    %v1466 = vpop.f32.mrb[0].mxu0
    %v1467 = vadd.f32 0.0, %v1466
    %v1468 = vpop.f32.mrb[0].mxu0
    %1469 = vmatprep.mubr.bf16.mxu0 %v946
    %1470 = vmatmul.mubr.bf16.gmra.mrb[0].mxu0 %v945
    %v1471 = vpop.f32.mrb[0].mxu0
    %v1472 = vadd.f32 0.0, %v1471
    %v1473 = vpop.f32.mrb[0].mxu0
    %v1474 = vpop.f32.mrb[0].mxu0
    %v1475 = vadd.f32 0.0, %v1474
    %v1476 = vpop.f32.mrb[0].mxu0
    %1477 = vmatprep.mubr.bf16.mxu0 %v948
    %1478 = vmatmul.mubr.bf16.gmra.mrb[0].mxu0 %v947
    %v1479 = vpop.f32.mrb[0].mxu0
    %v1480 = vadd.f32 0.0, %v1479
    %v1481 = vpop.f32.mrb[0].mxu0
    %v1482 = vpop.f32.mrb[0].mxu0
    %v1483 = vadd.f32 0.0, %v1482
    %v1484 = vpop.f32.mrb[0].mxu0
    %1485 = vmatprep.mubr.bf16.mxu0 %v950
    %1486 = vmatmul.mubr.bf16.gmra.mrb[0].mxu0 %v949
    %v1487 = vpop.f32.mrb[0].mxu0
    %v1488 = vadd.f32 0.0, %v1487
    %v1489 = vpop.f32.mrb[0].mxu0
    %v1490 = vpop.f32.mrb[0].mxu0
    %v1491 = vadd.f32 0.0, %v1490
    %v1492 = vpop.f32.mrb[0].mxu0
    %1493 = vmatprep.mubr.bf16.mxu0 %v952
    %1494 = vmatmul.mubr.bf16.gmra.mrb[0].mxu0 %v951
    %v1495 = vpop.f32.mrb[0].mxu0
    %v1496 = vadd.f32 0.0, %v1495
    %v1497 = vpop.f32.mrb[0].mxu0
    %v1498 = vpop.f32.mrb[0].mxu0
    %v1499 = vadd.f32 0.0, %v1498
    %v1500 = vpop.f32.mrb[0].mxu0
    %1501 = vmatprep.mubr.bf16.mxu0 %v954
    %1502 = vmatmul.mubr.bf16.gmra.mrb[0].mxu0 %v953
    %v1503 = vpop.f32.mrb[0].mxu0
    %v1504 = vadd.f32 0.0, %v1503
    %v1505 = vpop.f32.mrb[0].mxu0
    %v1506 = vpop.f32.mrb[0].mxu0
    %v1507 = vadd.f32 0.0, %v1506
    %v1508 = vpop.f32.mrb[0].mxu0
    %1509 = vmatprep.mubr.bf16.mxu0 %v956
    %1510 = vmatmul.mubr.bf16.gmra.mrb[0].mxu0 %v955
    %v1511 = vpop.f32.mrb[0].mxu0
    %v1512 = vadd.f32 0.0, %v1511
    %v1513 = vpop.f32.mrb[0].mxu0
    %v1514 = vpop.f32.mrb[0].mxu0
    %v1515 = vadd.f32 0.0, %v1514
    %v1516 = vpop.f32.mrb[0].mxu0
    %1517 = vmatprep.mubr.bf16.mxu0 %v958
    %1518 = vmatmul.mubr.bf16.gmra.mrb[0].mxu0 %v957
    %v1519 = vpop.f32.mrb[0].mxu0
    %v1520 = vadd.f32 0.0, %v1519
    %v1521 = vpop.f32.mrb[0].mxu0
    %v1522 = vpop.f32.mrb[0].mxu0
    %v1523 = vadd.f32 0.0, %v1522
    %v1524 = vpop.f32.mrb[0].mxu0
    %1525 = vmatprep.mubr.bf16.mxu0 %v960
    %1526 = vmatmul.mubr.bf16.gmra.mrb[0].mxu0 %v959
    %v1527 = vpop.f32.mrb[0].mxu0
    %v1528 = vadd.f32 0.0, %v1527
    %v1529 = vpop.f32.mrb[0].mxu0
    %v1530 = vpop.f32.mrb[0].mxu0
    %v1531 = vadd.f32 0.0, %v1530
    %v1532 = vpop.f32.mrb[0].mxu0
    %1533 = vmatprep.mubr.bf16.mxu0 %v962
    %1534 = vmatmul.mubr.bf16.gmra.mrb[0].mxu0 %v961
    %v1535 = vpop.f32.mrb[0].mxu0
    %v1536 = vadd.f32 0.0, %v1535
    %v1537 = vpop.f32.mrb[0].mxu0
    %v1538 = vpop.f32.mrb[0].mxu0
    %v1539 = vadd.f32 0.0, %v1538
    %v1540 = vpop.f32.mrb[0].mxu0
    %1541 = vmatprep.mubr.bf16.mxu0 %v964
    %1542 = vmatmul.mubr.bf16.gmra.mrb[0].mxu0 %v963
    %v1543 = vpop.f32.mrb[0].mxu0
    %v1544 = vadd.f32 0.0, %v1543
    %v1545 = vpop.f32.mrb[0].mxu0
    %v1546 = vpop.f32.mrb[0].mxu0
    %v1547 = vadd.f32 0.0, %v1546
    %v1548 = vpop.f32.mrb[0].mxu0
    %1549 = vmatprep.mubr.bf16.mxu0 %v966
    %1550 = vmatmul.mubr.bf16.gmra.mrb[0].mxu0 %v965
    %v1551 = vpop.f32.mrb[0].mxu0
    %v1552 = vadd.f32 0.0, %v1551
    %v1553 = vpop.f32.mrb[0].mxu0
    %v1554 = vpop.f32.mrb[0].mxu0
    %v1555 = vadd.f32 0.0, %v1554
    %v1556 = vpop.f32.mrb[0].mxu0
    %1557 = vmatprep.mubr.bf16.mxu0 %v968
    %1558 = vmatmul.mubr.bf16.gmra.mrb[0].mxu0 %v967
    %v1559 = vpop.f32.mrb[0].mxu0
    %v1560 = vadd.f32 0.0, %v1559
    %v1561 = vpop.f32.mrb[0].mxu0
    %v1562 = vpop.f32.mrb[0].mxu0
    %v1563 = vadd.f32 0.0, %v1562
    %v1564 = vpop.f32.mrb[0].mxu0
    %1565 = vmatprep.mubr.bf16.mxu0 %v970
    %1566 = vmatmul.mubr.bf16.gmra.mrb[0].mxu0 %v969
    %v1567 = vpop.f32.mrb[0].mxu0
    %v1568 = vadd.f32 0.0, %v1567
    %v1569 = vpop.f32.mrb[0].mxu0
    %v1570 = vpop.f32.mrb[0].mxu0
    %v1571 = vadd.f32 0.0, %v1570
    %v1572 = vpop.f32.mrb[0].mxu0
    %1573 = vmatprep.mubr.bf16.mxu0 %v972
    %1574 = vmatmul.mubr.bf16.gmra.mrb[0].mxu0 %v971
    %v1575 = vpop.f32.mrb[0].mxu0
    %v1576 = vadd.f32 0.0, %v1575
    %v1577 = vpop.f32.mrb[0].mxu0
    %v1578 = vpop.f32.mrb[0].mxu0
    %v1579 = vadd.f32 0.0, %v1578
    %v1580 = vpop.f32.mrb[0].mxu0
    %1581 = vmatprep.mubr.bf16.mxu0 %v974
    %1582 = vmatmul.mubr.bf16.gmra.mrb[0].mxu0 %v973
    %v1583 = vpop.f32.mrb[0].mxu0
    %v1584 = vadd.f32 0.0, %v1583
    %v1585 = vpop.f32.mrb[0].mxu0
    %v1586 = vpop.f32.mrb[0].mxu0
    %v1587 = vadd.f32 0.0, %v1586
    %v1588 = vpop.f32.mrb[0].mxu0
    %1589 = vmatprep.mubr.bf16.mxu0 %v976
    %1590 = vmatmul.mubr.bf16.gmra.mrb[0].mxu0 %v975
    %v1591 = vpop.f32.mrb[0].mxu0
    %v1592 = vadd.f32 0.0, %v1591
    %v1593 = vpop.f32.mrb[0].mxu0
    %v1594 = vpop.f32.mrb[0].mxu0
    %v1595 = vadd.f32 0.0, %v1594
    %v1596 = vpop.f32.mrb[0].mxu0
    %1597 = vmatprep.mubr.bf16.mxu0 %v978
    %1598 = vmatmul.mubr.bf16.gmra.mrb[0].mxu0 %v977
    %v1599 = vpop.f32.mrb[0].mxu0
    %v1600 = vadd.f32 0.0, %v1599
    %v1601 = vpop.f32.mrb[0].mxu0
    %v1602 = vpop.f32.mrb[0].mxu0
    %v1603 = vadd.f32 0.0, %v1602
    %v1604 = vpop.f32.mrb[0].mxu0
    %1605 = vmatprep.mubr.bf16.mxu0 %v980
    %1606 = vmatmul.mubr.bf16.gmra.mrb[0].mxu0 %v979
    %v1607 = vpop.f32.mrb[0].mxu0
    %v1608 = vadd.f32 0.0, %v1607
    %v1609 = vpop.f32.mrb[0].mxu0
    %v1610 = vpop.f32.mrb[0].mxu0
    %v1611 = vadd.f32 0.0, %v1610
    %v1612 = vpop.f32.mrb[0].mxu0
    %1613 = vmatprep.mubr.bf16.mxu0 %v982
    %1614 = vmatmul.mubr.bf16.gmra.mrb[0].mxu0 %v981
    %v1615 = vpop.f32.mrb[0].mxu0
    %v1616 = vadd.f32 0.0, %v1615
    %v1617 = vpop.f32.mrb[0].mxu0
    %v1618 = vpop.f32.mrb[0].mxu0
    %v1619 = vadd.f32 0.0, %v1618
    %v1620 = vpop.f32.mrb[0].mxu0
    %1621 = vmatprep.mubr.bf16.mxu0 %v984
    %1622 = vmatmul.mubr.bf16.gmra.mrb[0].mxu0 %v983
    %v1623 = vpop.f32.mrb[0].mxu0
    %v1624 = vadd.f32 0.0, %v1623
    %v1625 = vpop.f32.mrb[0].mxu0
    %v1626 = vpop.f32.mrb[0].mxu0
    %v1627 = vadd.f32 0.0, %v1626
    %v1628 = vpop.f32.mrb[0].mxu0
    %1629 = vmatprep.mubr.bf16.mxu0 %v986
    %1630 = vmatmul.mubr.bf16.gmra.mrb[0].mxu0 %v985
    %v1631 = vpop.f32.mrb[0].mxu0
    %v1632 = vadd.f32 0.0, %v1631
    %v1633 = vpop.f32.mrb[0].mxu0
    %v1634 = vpop.f32.mrb[0].mxu0
    %v1635 = vadd.f32 0.0, %v1634
    %v1636 = vpop.f32.mrb[0].mxu0
    %1637 = vmatprep.mubr.bf16.mxu0 %v988
    %1638 = vmatmul.mubr.bf16.gmra.mrb[0].mxu0 %v987
    %v1639 = vpop.f32.mrb[0].mxu0
    %v1640 = vadd.f32 0.0, %v1639
    %v1641 = vpop.f32.mrb[0].mxu0
    %v1642 = vpop.f32.mrb[0].mxu0
    %v1643 = vadd.f32 0.0, %v1642
    %v1644 = vpop.f32.mrb[0].mxu0
    %1645 = vmatprep.mubr.bf16.mxu0 %v990
    %1646 = vmatmul.mubr.bf16.gmra.mrb[0].mxu0 %v989
    %v1647 = vpop.f32.mrb[0].mxu0
    %v1648 = vadd.f32 0.0, %v1647
    %v1649 = vpop.f32.mrb[0].mxu0
    %v1650 = vpop.f32.mrb[0].mxu0
    %v1651 = vadd.f32 0.0, %v1650
    %v1652 = vpop.f32.mrb[0].mxu0
    %1653 = vmatprep.mubr.bf16.mxu0 %v992
    %1654 = vmatmul.mubr.bf16.gmra.mrb[0].mxu0 %v991
    %v1655 = vpop.f32.mrb[0].mxu0
    %v1656 = vadd.f32 0.0, %v1655
    %v1657 = vpop.f32.mrb[0].mxu0
    %v1658 = vpop.f32.mrb[0].mxu0
    %v1659 = vadd.f32 0.0, %v1658
    %v1660 = vpop.f32.mrb[0].mxu0
    %1661 = vmatprep.mubr.bf16.mxu0 %v994
    %1662 = vmatmul.mubr.bf16.gmra.mrb[0].mxu0 %v993
    %v1663 = vpop.f32.mrb[0].mxu0
    %v1664 = vadd.f32 0.0, %v1663
    %v1665 = vpop.f32.mrb[0].mxu0
    %v1666 = vpop.f32.mrb[0].mxu0
    %v1667 = vadd.f32 0.0, %v1666
    %v1668 = vpop.f32.mrb[0].mxu0
    %1669 = vmatprep.mubr.bf16.mxu0 %v996
    %1670 = vmatmul.mubr.bf16.gmra.mrb[0].mxu0 %v995
    %v1671 = vpop.f32.mrb[0].mxu0
    %v1672 = vadd.f32 0.0, %v1671
    %v1673 = vpop.f32.mrb[0].mxu0
    %v1674 = vpop.f32.mrb[0].mxu0
    %v1675 = vadd.f32 0.0, %v1674
    %v1676 = vpop.f32.mrb[0].mxu0
    %1677 = vmatprep.mubr.bf16.mxu0 %v998
    %1678 = vmatmul.mubr.bf16.gmra.mrb[0].mxu0 %v997
    %v1679 = vpop.f32.mrb[0].mxu0
    %v1680 = vadd.f32 0.0, %v1679
    %v1681 = vpop.f32.mrb[0].mxu0
    %v1682 = vpop.f32.mrb[0].mxu0
    %v1683 = vadd.f32 0.0, %v1682
    %v1684 = vpop.f32.mrb[0].mxu0
    %1685 = vmatprep.mubr.bf16.mxu0 %v1000
    %1686 = vmatmul.mubr.bf16.gmra.mrb[0].mxu0 %v999
    %v1687 = vpop.f32.mrb[0].mxu0
    %v1688 = vadd.f32 0.0, %v1687
    %v1689 = vpop.f32.mrb[0].mxu0
    %v1690 = vpop.f32.mrb[0].mxu0
    %v1691 = vadd.f32 0.0, %v1690
    %v1692 = vpop.f32.mrb[0].mxu0
    %1693 = vmatprep.mubr.bf16.mxu0 %v1002
    %1694 = vmatmul.mubr.bf16.gmra.mrb[0].mxu0 %v1001
    %v1695 = vpop.f32.mrb[0].mxu0
    %v1696 = vadd.f32 0.0, %v1695
    %v1697 = vpop.f32.mrb[0].mxu0
    %v1698 = vpop.f32.mrb[0].mxu0
    %v1699 = vadd.f32 0.0, %v1698
    %v1700 = vpop.f32.mrb[0].mxu0
    %1701 = vmatprep.mubr.bf16.mxu0 %v1004
    %1702 = vmatmul.mubr.bf16.gmra.mrb[0].mxu0 %v1003
    %v1703 = vpop.f32.mrb[0].mxu0
    %v1704 = vadd.f32 0.0, %v1703
    %v1705 = vpop.f32.mrb[0].mxu0
    %v1706 = vpop.f32.mrb[0].mxu0
    %v1707 = vadd.f32 0.0, %v1706
    %v1708 = vpop.f32.mrb[0].mxu0
    %1709 = vmatprep.mubr.bf16.mxu0 %v1006
    %1710 = vmatmul.mubr.bf16.gmra.mrb[0].mxu0 %v1005
    %v1711 = vpop.f32.mrb[0].mxu0
    %v1712 = vadd.f32 0.0, %v1711
    %v1713 = vpop.f32.mrb[0].mxu0
    %v1714 = vpop.f32.mrb[0].mxu0
    %v1715 = vadd.f32 0.0, %v1714
    %v1716 = vpop.f32.mrb[0].mxu0
    %1717 = vmatprep.mubr.bf16.mxu0 %v1008
    %1718 = vmatmul.mubr.bf16.gmra.mrb[0].mxu0 %v1007
    %v1719 = vpop.f32.mrb[0].mxu0
    %v1720 = vadd.f32 0.0, %v1719
    %v1721 = vpop.f32.mrb[0].mxu0
    %v1722 = vpop.f32.mrb[0].mxu0
    %v1723 = vadd.f32 0.0, %v1722
    %v1724 = vpop.f32.mrb[0].mxu0
    %1725 = vmatprep.mubr.bf16.mxu0 %v1010
    %1726 = vmatmul.mubr.bf16.gmra.mrb[0].mxu0 %v1009
    %v1727 = vpop.f32.mrb[0].mxu0
    %v1728 = vadd.f32 0.0, %v1727
    %v1729 = vpop.f32.mrb[0].mxu0
    %v1730 = vpop.f32.mrb[0].mxu0
    %v1731 = vadd.f32 0.0, %v1730
    %v1732 = vpop.f32.mrb[0].mxu0
    %1733 = vmatprep.mubr.bf16.mxu0 %v1012
    %1734 = vmatmul.mubr.bf16.gmra.mrb[0].mxu0 %v1011
    %v1735 = vpop.f32.mrb[0].mxu0
    %v1736 = vadd.f32 0.0, %v1735
    %v1737 = vpop.f32.mrb[0].mxu0
    %v1738 = vpop.f32.mrb[0].mxu0
    %v1739 = vadd.f32 0.0, %v1738
    %v1740 = vpop.f32.mrb[0].mxu0
    %1741 = vmatprep.mubr.bf16.mxu0 %v1014
    %1742 = vmatmul.mubr.bf16.gmra.mrb[0].mxu0 %v1013
    %v1743 = vpop.f32.mrb[0].mxu0
    %v1744 = vadd.f32 0.0, %v1743
    %v1745 = vpop.f32.mrb[0].mxu0
    %v1746 = vpop.f32.mrb[0].mxu0
    %v1747 = vadd.f32 0.0, %v1746
    %v1748 = vpop.f32.mrb[0].mxu0
    %1749 = vmatprep.mubr.bf16.mxu0 %v1016
    %1750 = vmatmul.mubr.bf16.gmra.mrb[0].mxu0 %v1015
    %v1751 = vpop.f32.mrb[0].mxu0
    %v1752 = vadd.f32 0.0, %v1751
    %v1753 = vpop.f32.mrb[0].mxu0
    %v1754 = vpop.f32.mrb[0].mxu0
    %v1755 = vadd.f32 0.0, %v1754
    %v1756 = vpop.f32.mrb[0].mxu0
    %1757 = vmatprep.mubr.bf16.mxu0 %v1018
    %1758 = vmatmul.mubr.bf16.gmra.mrb[0].mxu0 %v1017
    %v1759 = vpop.f32.mrb[0].mxu0
    %v1760 = vadd.f32 0.0, %v1759
    %v1761 = vpop.f32.mrb[0].mxu0
    %v1762 = vpop.f32.mrb[0].mxu0
    %v1763 = vadd.f32 0.0, %v1762
    %v1764 = vpop.f32.mrb[0].mxu0
    %1765 = vmatprep.mubr.bf16.mxu0 %v1020
    %1766 = vmatmul.mubr.bf16.gmra.mrb[0].mxu0 %v1019
    %v1767 = vpop.f32.mrb[0].mxu0
    %v1768 = vadd.f32 0.0, %v1767
    %v1769 = vpop.f32.mrb[0].mxu0
    %v1770 = vpop.f32.mrb[0].mxu0
    %v1771 = vadd.f32 0.0, %v1770
    %v1772 = vpop.f32.mrb[0].mxu0
    %1773 = vmatprep.mubr.bf16.mxu0 %v1022
    %1774 = vmatmul.mubr.bf16.gmra.mrb[0].mxu0 %v1021
    %v1775 = vpop.f32.mrb[0].mxu0
    %v1776 = vadd.f32 0.0, %v1775
    %v1777 = vpop.f32.mrb[0].mxu0
    %v1778 = vpop.f32.mrb[0].mxu0
    %v1779 = vadd.f32 0.0, %v1778
    %v1780 = vpop.f32.mrb[0].mxu0
    %1781 = vmatprep.mubr.bf16.mxu0 %v1024
    %1782 = vmatmul.mubr.bf16.gmra.mrb[0].mxu0 %v1023
    %v1783 = vpop.f32.mrb[0].mxu0
    %v1784 = vadd.f32 0.0, %v1783
    %v1785 = vpop.f32.mrb[0].mxu0
    %v1786 = vpop.f32.mrb[0].mxu0
    %v1787 = vadd.f32 0.0, %v1786
    %v1788 = vpop.f32.mrb[0].mxu0
    %1789 = vmatprep.mubr.bf16.mxu0 %v1026
    %1790 = vmatmul.mubr.bf16.gmra.mrb[0].mxu0 %v1025
    %v1791 = vpop.f32.mrb[0].mxu0
    %v1792 = vadd.f32 0.0, %v1791
    %v1793 = vpop.f32.mrb[0].mxu0
    %v1794 = vpop.f32.mrb[0].mxu0
    %v1795 = vadd.f32 0.0, %v1794
    %v1796 = vpop.f32.mrb[0].mxu0
    %1797 = vmatprep.mubr.bf16.mxu0 %v1028
    %1798 = vmatmul.mubr.bf16.gmra.mrb[0].mxu0 %v1027
    %v1799 = vpop.f32.mrb[0].mxu0
    %v1800 = vadd.f32 0.0, %v1799
    %v1801 = vpop.f32.mrb[0].mxu0
    %v1802 = vpop.f32.mrb[0].mxu0
    %v1803 = vadd.f32 0.0, %v1802
    %v1804 = vpop.f32.mrb[0].mxu0
    %1805 = vmatprep.mubr.bf16.mxu0 %v1030
    %1806 = vmatmul.mubr.bf16.gmra.mrb[0].mxu0 %v1029
    %v1807 = vpop.f32.mrb[0].mxu0
    %v1808 = vadd.f32 0.0, %v1807
    %v1809 = vpop.f32.mrb[0].mxu0
    %v1810 = vpop.f32.mrb[0].mxu0
    %v1811 = vadd.f32 0.0, %v1810
    %v1812 = vpop.f32.mrb[0].mxu0
    %1813 = vmatprep.mubr.bf16.mxu0 %v1032
    %1814 = vmatmul.mubr.bf16.gmra.mrb[0].mxu0 %v1031
    %v1815 = vpop.f32.mrb[0].mxu0
    %v1816 = vadd.f32 0.0, %v1815
    %v1817 = vpop.f32.mrb[0].mxu0
    %v1818 = vpop.f32.mrb[0].mxu0
    %v1819 = vadd.f32 0.0, %v1818
    %v1820 = vpop.f32.mrb[0].mxu0
    %1821 = vmatprep.mubr.bf16.mxu0 %v1034
    %1822 = vmatmul.mubr.bf16.gmra.mrb[0].mxu0 %v1033
    %v1823 = vpop.f32.mrb[0].mxu0
    %v1824 = vadd.f32 0.0, %v1823
    %v1825 = vpop.f32.mrb[0].mxu0
    %v1826 = vpop.f32.mrb[0].mxu0
    %v1827 = vadd.f32 0.0, %v1826
    %v1828 = vpop.f32.mrb[0].mxu0
    %1829 = vmatprep.mubr.bf16.mxu0 %v1036
    %1830 = vmatmul.mubr.bf16.gmra.mrb[0].mxu0 %v1035
    %v1831 = vpop.f32.mrb[0].mxu0
    %v1832 = vadd.f32 0.0, %v1831
    %v1833 = vpop.f32.mrb[0].mxu0
    %v1834 = vpop.f32.mrb[0].mxu0
    %v1835 = vadd.f32 0.0, %v1834
    %v1836 = vpop.f32.mrb[0].mxu0
    %1837 = vmatprep.mubr.bf16.mxu0 %v1038
    %1838 = vmatmul.mubr.bf16.gmra.mrb[0].mxu0 %v1037
    %v1839 = vpop.f32.mrb[0].mxu0
    %v1840 = vadd.f32 0.0, %v1839
    %v1841 = vpop.f32.mrb[0].mxu0
    %v1842 = vpop.f32.mrb[0].mxu0
    %v1843 = vadd.f32 0.0, %v1842
    %v1844 = vpop.f32.mrb[0].mxu0
    %1845 = vmatprep.mubr.bf16.mxu0 %v1040
    %1846 = vmatmul.mubr.bf16.gmra.mrb[0].mxu0 %v1039
    %v1847 = vpop.f32.mrb[0].mxu0
    %v1848 = vadd.f32 0.0, %v1847
    %v1849 = vpop.f32.mrb[0].mxu0
    %v1850 = vpop.f32.mrb[0].mxu0
    %v1851 = vadd.f32 0.0, %v1850
    %v1852 = vpop.f32.mrb[0].mxu0
    %1853 = vmatprep.mubr.bf16.mxu0 %v1042
    %1854 = vmatmul.mubr.bf16.gmra.mrb[0].mxu0 %v1041
    %v1855 = vpop.f32.mrb[0].mxu0
    %v1856 = vadd.f32 0.0, %v1855
    %v1857 = vpop.f32.mrb[0].mxu0
    %v1858 = vpop.f32.mrb[0].mxu0
    %v1859 = vadd.f32 0.0, %v1858
    %v1860 = vpop.f32.mrb[0].mxu0
    %1861 = vmatprep.mubr.bf16.mxu0 %v1044
    %1862 = vmatmul.mubr.bf16.gmra.mrb[0].mxu0 %v1043
    %v1863 = vpop.f32.mrb[0].mxu0
    %v1864 = vadd.f32 0.0, %v1863
    %v1865 = vpop.f32.mrb[0].mxu0
    %v1866 = vpop.f32.mrb[0].mxu0
    %v1867 = vadd.f32 0.0, %v1866
    %v1868 = vpop.f32.mrb[0].mxu0
    %1869 = vmatprep.mubr.bf16.mxu0 %v1046
    %1870 = vmatmul.mubr.bf16.gmra.mrb[0].mxu0 %v1045
    %v1871 = vpop.f32.mrb[0].mxu0
    %v1872 = vadd.f32 0.0, %v1871
    %v1873 = vpop.f32.mrb[0].mxu0
    %v1874 = vpop.f32.mrb[0].mxu0
    %v1875 = vadd.f32 0.0, %v1874
    %v1876 = vpop.f32.mrb[0].mxu0
    %1877 = vmatprep.mubr.bf16.mxu0 %v1048
    %1878 = vmatmul.mubr.bf16.gmra.mrb[0].mxu0 %v1047
    %v1879 = vpop.f32.mrb[0].mxu0
    %v1880 = vadd.f32 0.0, %v1879
    %v1881 = vpop.f32.mrb[0].mxu0
    %v1882 = vpop.f32.mrb[0].mxu0
    %v1883 = vadd.f32 0.0, %v1882
    %v1884 = vpop.f32.mrb[0].mxu0
    %1885 = vmatprep.mubr.bf16.mxu0 %v1050
    %1886 = vmatmul.mubr.bf16.gmra.mrb[0].mxu0 %v1049
    %v1887 = vpop.f32.mrb[0].mxu0
    %v1888 = vadd.f32 0.0, %v1887
    %v1889 = vpop.f32.mrb[0].mxu0
    %v1890 = vpop.f32.mrb[0].mxu0
    %v1891 = vadd.f32 0.0, %v1890
    %v1892 = vpop.f32.mrb[0].mxu0
    %1893 = vmatprep.mubr.bf16.mxu0 %v1052
    %1894 = vmatmul.mubr.bf16.gmra.mrb[0].mxu0 %v1051
    %v1895 = vpop.f32.mrb[0].mxu0
    %v1896 = vadd.f32 0.0, %v1895
    %v1897 = vpop.f32.mrb[0].mxu0
    %v1898 = vpop.f32.mrb[0].mxu0
    %v1899 = vadd.f32 0.0, %v1898
    %v1900 = vpop.f32.mrb[0].mxu0
    %1901 = vmatprep.mubr.bf16.mxu0 %v1054
    %1902 = vmatmul.mubr.bf16.gmra.mrb[0].mxu0 %v1053
    %v1903 = vpop.f32.mrb[0].mxu0
    %v1904 = vadd.f32 0.0, %v1903
    %v1905 = vpop.f32.mrb[0].mxu0
    %v1906 = vpop.f32.mrb[0].mxu0
    %v1907 = vadd.f32 0.0, %v1906
    %v1908 = vpop.f32.mrb[0].mxu0
    %1909 = vmatprep.mubr.bf16.mxu0 %v1056
    %1910 = vmatmul.mubr.bf16.gmra.mrb[0].mxu0 %v1055
    %v1911 = vpop.f32.mrb[0].mxu0
    %v1912 = vadd.f32 0.0, %v1911
    %v1913 = vpop.f32.mrb[0].mxu0
    %v1914 = vpop.f32.mrb[0].mxu0
    %v1915 = vadd.f32 0.0, %v1914
    %v1916 = vpop.f32.mrb[0].mxu0
    %1917 = vmatprep.mubr.bf16.mxu0 %v1058
    %1918 = vmatmul.mubr.bf16.gmra.mrb[0].mxu0 %v1057
    %v1919 = vpop.f32.mrb[0].mxu0
    %v1920 = vadd.f32 0.0, %v1919
    %v1921 = vpop.f32.mrb[0].mxu0
    %v1922 = vpop.f32.mrb[0].mxu0
    %v1923 = vadd.f32 0.0, %v1922
    %v1924 = vpop.f32.mrb[0].mxu0
    %1925 = vmatprep.mubr.bf16.mxu0 %v1060
    %1926 = vmatmul.mubr.bf16.gmra.mrb[0].mxu0 %v1059
    %v1927 = vpop.f32.mrb[0].mxu0
    %v1928 = vadd.f32 0.0, %v1927
    %v1929 = vpop.f32.mrb[0].mxu0
    %v1930 = vpop.f32.mrb[0].mxu0
    %v1931 = vadd.f32 0.0, %v1930
    %v1932 = vpop.f32.mrb[0].mxu0
    %1933 = vmatprep.mubr.bf16.mxu0 %v1062
    %1934 = vmatmul.mubr.bf16.gmra.mrb[0].mxu0 %v1061
    %v1935 = vpop.f32.mrb[0].mxu0
    %v1936 = vadd.f32 0.0, %v1935
    %v1937 = vpop.f32.mrb[0].mxu0
    %v1938 = vpop.f32.mrb[0].mxu0
    %v1939 = vadd.f32 0.0, %v1938
    %v1940 = vpop.f32.mrb[0].mxu0
    %1941 = vmatprep.mubr.bf16.mxu0 %v1064
    %1942 = vmatmul.mubr.bf16.gmra.mrb[0].mxu0 %v1063
    %v1943 = vpop.f32.mrb[0].mxu0
    %v1944 = vadd.f32 0.0, %v1943
    %v1945 = vpop.f32.mrb[0].mxu0
    %v1946 = vpop.f32.mrb[0].mxu0
    %v1947 = vadd.f32 0.0, %v1946
    %v1948 = vpop.f32.mrb[0].mxu0
    %1949 = vmatprep.mubr.bf16.mxu0 %v1066
    %1950 = vmatmul.mubr.bf16.gmra.mrb[0].mxu0 %v1065
    %v1951 = vpop.f32.mrb[0].mxu0
    %v1952 = vadd.f32 0.0, %v1951
    %v1953 = vpop.f32.mrb[0].mxu0
    %v1954 = vpop.f32.mrb[0].mxu0
    %v1955 = vadd.f32 0.0, %v1954
    %v1956 = vpop.f32.mrb[0].mxu0
    %1957 = vmatprep.mubr.bf16.mxu0 %v1068
    %1958 = vmatmul.mubr.bf16.gmra.mrb[0].mxu0 %v1067
    %v1959 = vpop.f32.mrb[0].mxu0
    %v1960 = vadd.f32 0.0, %v1959
    %v1961 = vpop.f32.mrb[0].mxu0
    %v1962 = vpop.f32.mrb[0].mxu0
    %v1963 = vadd.f32 0.0, %v1962
    %v1964 = vpop.f32.mrb[0].mxu0
    %1965 = vmatprep.mubr.bf16.mxu0 %v1070
    %1966 = vmatmul.mubr.bf16.gmra.mrb[0].mxu0 %v1069
    %v1967 = vpop.f32.mrb[0].mxu0
    %v1968 = vadd.f32 0.0, %v1967
    %v1969 = vpop.f32.mrb[0].mxu0
    %v1970 = vpop.f32.mrb[0].mxu0
    %v1971 = vadd.f32 0.0, %v1970
    %v1972 = vpop.f32.mrb[0].mxu0
    %1973 = vmatprep.mubr.bf16.mxu0 %v1072
    %1974 = vmatmul.mubr.bf16.gmra.mrb[0].mxu0 %v1071
    %v1975 = vpop.f32.mrb[0].mxu0
    %v1976 = vadd.f32 0.0, %v1975
    %v1977 = vpop.f32.mrb[0].mxu0
    %v1978 = vpop.f32.mrb[0].mxu0
    %v1979 = vadd.f32 0.0, %v1978
    %v1980 = vpop.f32.mrb[0].mxu0
    %1981 = vmatprep.mubr.bf16.mxu0 %v1074
    %1982 = vmatmul.mubr.bf16.gmra.mrb[0].mxu0 %v1073
    %v1983 = vpop.f32.mrb[0].mxu0
    %v1984 = vadd.f32 0.0, %v1983
    %v1985 = vpop.f32.mrb[0].mxu0
    %v1986 = vpop.f32.mrb[0].mxu0
    %v1987 = vadd.f32 0.0, %v1986
    %v1988 = vpop.f32.mrb[0].mxu0
    %1989 = vmatprep.mubr.bf16.mxu0 %v1076
    %1990 = vmatmul.mubr.bf16.gmra.mrb[0].mxu0 %v1075
    %v1991 = vpop.f32.mrb[0].mxu0
    %v1992 = vadd.f32 0.0, %v1991
    %v1993 = vpop.f32.mrb[0].mxu0
    %v1994 = vpop.f32.mrb[0].mxu0
    %v1995 = vadd.f32 0.0, %v1994
    %v1996 = vpop.f32.mrb[0].mxu0
    %1997 = vmatprep.mubr.bf16.mxu0 %v1078
    %1998 = vmatmul.mubr.bf16.gmra.mrb[0].mxu0 %v1077
    %v1999 = vpop.f32.mrb[0].mxu0
    %v2000 = vadd.f32 0.0, %v1999
    %v2001 = vpop.f32.mrb[0].mxu0
    %v2002 = vpop.f32.mrb[0].mxu0
    %v2003 = vadd.f32 0.0, %v2002
    %v2004 = vpop.f32.mrb[0].mxu0
    %2005 = vmatprep.mubr.bf16.mxu0 %v1080
    %2006 = vmatmul.mubr.bf16.gmra.mrb[0].mxu0 %v1079
    %v2007 = vpop.f32.mrb[0].mxu0
    %v2008 = vadd.f32 0.0, %v2007
    %v2009 = vpop.f32.mrb[0].mxu0
    %v2010 = vpop.f32.mrb[0].mxu0
    %v2011 = vadd.f32 0.0, %v2010
    %v2012 = vpop.f32.mrb[0].mxu0
    %2013 = vmatprep.mubr.bf16.mxu0 %v1082
    %2014 = vmatmul.mubr.bf16.gmra.mrb[0].mxu0 %v1081
    %v2015 = vpop.f32.mrb[0].mxu0
    %v2016 = vadd.f32 0.0, %v2015
    %v2017 = vpop.f32.mrb[0].mxu0
    %v2018 = vpop.f32.mrb[0].mxu0
    %v2019 = vadd.f32 0.0, %v2018
    %v2020 = vpop.f32.mrb[0].mxu0
    %2021 = vmatprep.mubr.bf16.mxu0 %v1084
    %2022 = vmatmul.mubr.bf16.gmra.mrb[0].mxu0 %v1083
    %v2023 = vpop.f32.mrb[0].mxu0
    %v2024 = vadd.f32 0.0, %v2023
    %v2025 = vpop.f32.mrb[0].mxu0
    %v2026 = vpop.f32.mrb[0].mxu0
    %v2027 = vadd.f32 0.0, %v2026
    %v2028 = vpop.f32.mrb[0].mxu0
    %2029 = vmatprep.mubr.bf16.mxu0 %v1086
    %2030 = vmatmul.mubr.bf16.gmra.mrb[0].mxu0 %v1085
    %v2031 = vpop.f32.mrb[0].mxu0
    %v2032 = vadd.f32 0.0, %v2031
    %v2033 = vpop.f32.mrb[0].mxu0
    %v2034 = vpop.f32.mrb[0].mxu0
    %v2035 = vadd.f32 0.0, %v2034
    %v2036 = vpop.f32.mrb[0].mxu0
    %2037 = vmatprep.mubr.bf16.mxu0 %v1088
    %2038 = vmatmul.mubr.bf16.gmra.mrb[0].mxu0 %v1087
    %v2039 = vpop.f32.mrb[0].mxu0
    %v2040 = vadd.f32 0.0, %v2039
    %v2041 = vpop.f32.mrb[0].mxu0
    %v2042 = vpop.f32.mrb[0].mxu0
    %v2043 = vadd.f32 0.0, %v2042
    %v2044 = vpop.f32.mrb[0].mxu0
    %2045 = vmatprep.mubr.bf16.mxu0 %v1090
    %2046 = vmatmul.mubr.bf16.gmra.mrb[0].mxu0 %v1089
    %v2047 = vpop.f32.mrb[0].mxu0
    %v2048 = vadd.f32 0.0, %v2047
    %v2049 = vpop.f32.mrb[0].mxu0
    %v2050 = vpop.f32.mrb[0].mxu0
    %v2051 = vadd.f32 0.0, %v2050
    %v2052 = vpop.f32.mrb[0].mxu0
    %2053 = vmatprep.mubr.bf16.mxu0 %v1092
    %2054 = vmatmul.mubr.bf16.gmra.mrb[0].mxu0 %v1091
    %v2055 = vpop.f32.mrb[0].mxu0
    %v2056 = vadd.f32 0.0, %v2055
    %v2057 = vpop.f32.mrb[0].mxu0
    %v2058 = vpop.f32.mrb[0].mxu0
    %v2059 = vadd.f32 0.0, %v2058
    %v2060 = vpop.f32.mrb[0].mxu0
    %2061 = vmatprep.mubr.bf16.mxu0 %v1094
    %2062 = vmatmul.mubr.bf16.gmra.mrb[0].mxu0 %v1093
    %v2063 = vpop.f32.mrb[0].mxu0
    %v2064 = vadd.f32 0.0, %v2063
    %v2065 = vpop.f32.mrb[0].mxu0
    %v2066 = vpop.f32.mrb[0].mxu0
    %v2067 = vadd.f32 0.0, %v2066
    %v2068 = vpop.f32.mrb[0].mxu0
    %2069 = vmatprep.mubr.bf16.mxu0 %v1096
    %2070 = vmatmul.mubr.bf16.gmra.mrb[0].mxu0 %v1095
    %v2071 = vpop.f32.mrb[0].mxu0
    %v2072 = vadd.f32 0.0, %v2071
    %v2073 = vpop.f32.mrb[0].mxu0
    %v2074 = vpop.f32.mrb[0].mxu0
    %v2075 = vadd.f32 0.0, %v2074
    %v2076 = vpop.f32.mrb[0].mxu0
    %2077 = vmatprep.mubr.bf16.mxu0 %v1098
    %2078 = vmatmul.mubr.bf16.gmra.mrb[0].mxu0 %v1097
    %v2079 = vpop.f32.mrb[0].mxu0
    %v2080 = vadd.f32 0.0, %v2079
    %v2081 = vpop.f32.mrb[0].mxu0
    %v2082 = vpop.f32.mrb[0].mxu0
    %v2083 = vadd.f32 0.0, %v2082
    %v2084 = vpop.f32.mrb[0].mxu0
    %2085 = vmatprep.mubr.bf16.mxu0 %v1100
    %2086 = vmatmul.mubr.bf16.gmra.mrb[0].mxu0 %v1099
    %v2087 = vpop.f32.mrb[0].mxu0
    %v2088 = vadd.f32 0.0, %v2087
    %v2089 = vpop.f32.mrb[0].mxu0
    %v2090 = vpop.f32.mrb[0].mxu0
    %v2091 = vadd.f32 0.0, %v2090
    %v2092 = vpop.f32.mrb[0].mxu0
    %2093 = vdwg.mxu0
    %vm2094 = vcmask 400384
    %2095 = vst.msk [vmem:[%s3] sm:$0xff] %vm2094, %v1328
    %2096 = vst.msk [vmem:[%s3 + $0x8] sm:$0xff] %vm2094, %v1331
    %2097 = vst.msk [vmem:[%s3 + $0x10] sm:$0xff] %vm2094, %v1336
    %2098 = vst.msk [vmem:[%s3 + $0x18] sm:$0xff] %vm2094, %v1339
    %2099 = vst.msk [vmem:[%s3 + $0x20] sm:$0xff] %vm2094, %v1344
    %2100 = vst.msk [vmem:[%s3 + $0x28] sm:$0xff] %vm2094, %v1347
    %2101 = vst.msk [vmem:[%s3 + $0x30] sm:$0xff] %vm2094, %v1352
    %2102 = vst.msk [vmem:[%s3 + $0x38] sm:$0xff] %vm2094, %v1355
    %2103 = vst.msk [vmem:[%s3 + $0x40] sm:$0xff] %vm2094, %v1360
    %2104 = vst.msk [vmem:[%s3 + $0x48] sm:$0xff] %vm2094, %v1363
    %2105 = vst.msk [vmem:[%s3 + $0x50] sm:$0xff] %vm2094, %v1368
    %2106 = vst.msk [vmem:[%s3 + $0x58] sm:$0xff] %vm2094, %v1371
    %2107 = vst.msk [vmem:[%s3 + $0x60] sm:$0xff] %vm2094, %v1376
    %2108 = vst.msk [vmem:[%s3 + $0x68] sm:$0xff] %vm2094, %v1379
    %2109 = vst.msk [vmem:[%s3 + $0x70] sm:$0xff] %vm2094, %v1384
    %2110 = vst.msk [vmem:[%s3 + $0x78] sm:$0xff] %vm2094, %v1387
    %2111 = vst.msk [vmem:[%s3 + $0x80] sm:$0xff] %vm2094, %v1392
    %2112 = vst.msk [vmem:[%s3 + $0x88] sm:$0xff] %vm2094, %v1395
    %2113 = vst.msk [vmem:[%s3 + $0x90] sm:$0xff] %vm2094, %v1400
    %2114 = vst.msk [vmem:[%s3 + $0x98] sm:$0xff] %vm2094, %v1403
    %2115 = vst.msk [vmem:[%s3 + $0xa0] sm:$0xff] %vm2094, %v1408
    %2116 = vst.msk [vmem:[%s3 + $0xa8] sm:$0xff] %vm2094, %v1411
    %2117 = vst.msk [vmem:[%s3 + $0xb0] sm:$0xff] %vm2094, %v1416
    %2118 = vst.msk [vmem:[%s3 + $0xb8] sm:$0xff] %vm2094, %v1419
    %2119 = vst.msk [vmem:[%s3 + $0xc0] sm:$0xff] %vm2094, %v1424
    %2120 = vst.msk [vmem:[%s3 + $0xc8] sm:$0xff] %vm2094, %v1427
    %2121 = vst.msk [vmem:[%s3 + $0xd0] sm:$0xff] %vm2094, %v1432
    %2122 = vst.msk [vmem:[%s3 + $0xd8] sm:$0xff] %vm2094, %v1435
    %2123 = vst.msk [vmem:[%s3 + $0xe0] sm:$0xff] %vm2094, %v1440
    %2124 = vst.msk [vmem:[%s3 + $0xe8] sm:$0xff] %vm2094, %v1443
    %2125 = vst.msk [vmem:[%s3 + $0xf0] sm:$0xff] %vm2094, %v1448
    %2126 = vst.msk [vmem:[%s3 + $0xf8] sm:$0xff] %vm2094, %v1451
    %2127 = vst.msk [vmem:[%s3 + $0x100] sm:$0xff] %vm2094, %v1456
    %2128 = vst.msk [vmem:[%s3 + $0x108] sm:$0xff] %vm2094, %v1459
    %2129 = vst.msk [vmem:[%s3 + $0x110] sm:$0xff] %vm2094, %v1464
    %2130 = vst.msk [vmem:[%s3 + $0x118] sm:$0xff] %vm2094, %v1467
    %2131 = vst.msk [vmem:[%s3 + $0x120] sm:$0xff] %vm2094, %v1472
    %2132 = vst.msk [vmem:[%s3 + $0x128] sm:$0xff] %vm2094, %v1475
    %2133 = vst.msk [vmem:[%s3 + $0x130] sm:$0xff] %vm2094, %v1480
    %2134 = vst.msk [vmem:[%s3 + $0x138] sm:$0xff] %vm2094, %v1483
    %2135 = vst.msk [vmem:[%s3 + $0x140] sm:$0xff] %vm2094, %v1488
    %2136 = vst.msk [vmem:[%s3 + $0x148] sm:$0xff] %vm2094, %v1491
    %2137 = vst.msk [vmem:[%s3 + $0x150] sm:$0xff] %vm2094, %v1496
    %2138 = vst.msk [vmem:[%s3 + $0x158] sm:$0xff] %vm2094, %v1499
    %2139 = vst.msk [vmem:[%s3 + $0x160] sm:$0xff] %vm2094, %v1504
    %2140 = vst.msk [vmem:[%s3 + $0x168] sm:$0xff] %vm2094, %v1507
    %2141 = vst.msk [vmem:[%s3 + $0x170] sm:$0xff] %vm2094, %v1512
    %2142 = vst.msk [vmem:[%s3 + $0x178] sm:$0xff] %vm2094, %v1515
    %2143 = vst.msk [vmem:[%s3 + $0x180] sm:$0xff] %vm2094, %v1520
    %2144 = vst.msk [vmem:[%s3 + $0x188] sm:$0xff] %vm2094, %v1523
    %2145 = vst.msk [vmem:[%s3 + $0x190] sm:$0xff] %vm2094, %v1528
    %2146 = vst.msk [vmem:[%s3 + $0x198] sm:$0xff] %vm2094, %v1531
    %2147 = vst.msk [vmem:[%s3 + $0x1a0] sm:$0xff] %vm2094, %v1536
    %2148 = vst.msk [vmem:[%s3 + $0x1a8] sm:$0xff] %vm2094, %v1539
    %2149 = vst.msk [vmem:[%s3 + $0x1b0] sm:$0xff] %vm2094, %v1544
    %2150 = vst.msk [vmem:[%s3 + $0x1b8] sm:$0xff] %vm2094, %v1547
    %2151 = vst.msk [vmem:[%s3 + $0x1c0] sm:$0xff] %vm2094, %v1552
    %2152 = vst.msk [vmem:[%s3 + $0x1c8] sm:$0xff] %vm2094, %v1555
    %2153 = vst.msk [vmem:[%s3 + $0x1d0] sm:$0xff] %vm2094, %v1560
    %2154 = vst.msk [vmem:[%s3 + $0x1d8] sm:$0xff] %vm2094, %v1563
    %2155 = vst.msk [vmem:[%s3 + $0x1e0] sm:$0xff] %vm2094, %v1568
    %2156 = vst.msk [vmem:[%s3 + $0x1e8] sm:$0xff] %vm2094, %v1571
    %2157 = vst.msk [vmem:[%s3 + $0x1f0] sm:$0xff] %vm2094, %v1576
    %2158 = vst.msk [vmem:[%s3 + $0x1f8] sm:$0xff] %vm2094, %v1579
    %2159 = vst.msk [vmem:[%s3 + $0x200] sm:$0xff] %vm2094, %v1584
    %2160 = vst.msk [vmem:[%s3 + $0x208] sm:$0xff] %vm2094, %v1587
    %2161 = vst.msk [vmem:[%s3 + $0x210] sm:$0xff] %vm2094, %v1592
    %2162 = vst.msk [vmem:[%s3 + $0x218] sm:$0xff] %vm2094, %v1595
    %2163 = vst.msk [vmem:[%s3 + $0x220] sm:$0xff] %vm2094, %v1600
    %2164 = vst.msk [vmem:[%s3 + $0x228] sm:$0xff] %vm2094, %v1603
    %2165 = vst.msk [vmem:[%s3 + $0x230] sm:$0xff] %vm2094, %v1608
    %2166 = vst.msk [vmem:[%s3 + $0x238] sm:$0xff] %vm2094, %v1611
    %2167 = vst.msk [vmem:[%s3 + $0x240] sm:$0xff] %vm2094, %v1616
    %2168 = vst.msk [vmem:[%s3 + $0x248] sm:$0xff] %vm2094, %v1619
    %2169 = vst.msk [vmem:[%s3 + $0x250] sm:$0xff] %vm2094, %v1624
    %2170 = vst.msk [vmem:[%s3 + $0x258] sm:$0xff] %vm2094, %v1627
    %2171 = vst.msk [vmem:[%s3 + $0x260] sm:$0xff] %vm2094, %v1632
    %2172 = vst.msk [vmem:[%s3 + $0x268] sm:$0xff] %vm2094, %v1635
    %2173 = vst.msk [vmem:[%s3 + $0x270] sm:$0xff] %vm2094, %v1640
    %2174 = vst.msk [vmem:[%s3 + $0x278] sm:$0xff] %vm2094, %v1643
    %2175 = vst.msk [vmem:[%s3 + $0x280] sm:$0xff] %vm2094, %v1648
    %2176 = vst.msk [vmem:[%s3 + $0x288] sm:$0xff] %vm2094, %v1651
    %2177 = vst.msk [vmem:[%s3 + $0x290] sm:$0xff] %vm2094, %v1656
    %2178 = vst.msk [vmem:[%s3 + $0x298] sm:$0xff] %vm2094, %v1659
    %2179 = vst.msk [vmem:[%s3 + $0x2a0] sm:$0xff] %vm2094, %v1664
    %2180 = vst.msk [vmem:[%s3 + $0x2a8] sm:$0xff] %vm2094, %v1667
    %2181 = vst.msk [vmem:[%s3 + $0x2b0] sm:$0xff] %vm2094, %v1672
    %2182 = vst.msk [vmem:[%s3 + $0x2b8] sm:$0xff] %vm2094, %v1675
    %2183 = vst.msk [vmem:[%s3 + $0x2c0] sm:$0xff] %vm2094, %v1680
    %2184 = vst.msk [vmem:[%s3 + $0x2c8] sm:$0xff] %vm2094, %v1683
    %2185 = vst.msk [vmem:[%s3 + $0x2d0] sm:$0xff] %vm2094, %v1688
    %2186 = vst.msk [vmem:[%s3 + $0x2d8] sm:$0xff] %vm2094, %v1691
    %2187 = vst.msk [vmem:[%s3 + $0x2e0] sm:$0xff] %vm2094, %v1696
    %2188 = vst.msk [vmem:[%s3 + $0x2e8] sm:$0xff] %vm2094, %v1699
    %2189 = vst.msk [vmem:[%s3 + $0x2f0] sm:$0xff] %vm2094, %v1704
    %2190 = vst.msk [vmem:[%s3 + $0x2f8] sm:$0xff] %vm2094, %v1707
    %2191 = vst.msk [vmem:[%s3 + $0x300] sm:$0xff] %vm2094, %v1712
    %2192 = vst.msk [vmem:[%s3 + $0x308] sm:$0xff] %vm2094, %v1715
    %2193 = vst.msk [vmem:[%s3 + $0x310] sm:$0xff] %vm2094, %v1720
    %2194 = vst.msk [vmem:[%s3 + $0x318] sm:$0xff] %vm2094, %v1723
    %2195 = vst.msk [vmem:[%s3 + $0x320] sm:$0xff] %vm2094, %v1728
    %2196 = vst.msk [vmem:[%s3 + $0x328] sm:$0xff] %vm2094, %v1731
    %2197 = vst.msk [vmem:[%s3 + $0x330] sm:$0xff] %vm2094, %v1736
    %2198 = vst.msk [vmem:[%s3 + $0x338] sm:$0xff] %vm2094, %v1739
    %2199 = vst.msk [vmem:[%s3 + $0x340] sm:$0xff] %vm2094, %v1744
    %2200 = vst.msk [vmem:[%s3 + $0x348] sm:$0xff] %vm2094, %v1747
    %2201 = vst.msk [vmem:[%s3 + $0x350] sm:$0xff] %vm2094, %v1752
    %2202 = vst.msk [vmem:[%s3 + $0x358] sm:$0xff] %vm2094, %v1755
    %2203 = vst.msk [vmem:[%s3 + $0x360] sm:$0xff] %vm2094, %v1760
    %2204 = vst.msk [vmem:[%s3 + $0x368] sm:$0xff] %vm2094, %v1763
    %2205 = vst.msk [vmem:[%s3 + $0x370] sm:$0xff] %vm2094, %v1768
    %2206 = vst.msk [vmem:[%s3 + $0x378] sm:$0xff] %vm2094, %v1771
    %2207 = vst.msk [vmem:[%s3 + $0x380] sm:$0xff] %vm2094, %v1776
    %2208 = vst.msk [vmem:[%s3 + $0x388] sm:$0xff] %vm2094, %v1779
    %2209 = vst.msk [vmem:[%s3 + $0x390] sm:$0xff] %vm2094, %v1784
    %2210 = vst.msk [vmem:[%s3 + $0x398] sm:$0xff] %vm2094, %v1787
    %2211 = vst.msk [vmem:[%s3 + $0x3a0] sm:$0xff] %vm2094, %v1792
    %2212 = vst.msk [vmem:[%s3 + $0x3a8] sm:$0xff] %vm2094, %v1795
    %2213 = vst.msk [vmem:[%s3 + $0x3b0] sm:$0xff] %vm2094, %v1800
    %2214 = vst.msk [vmem:[%s3 + $0x3b8] sm:$0xff] %vm2094, %v1803
    %2215 = vst.msk [vmem:[%s3 + $0x3c0] sm:$0xff] %vm2094, %v1808
    %2216 = vst.msk [vmem:[%s3 + $0x3c8] sm:$0xff] %vm2094, %v1811
    %2217 = vst.msk [vmem:[%s3 + $0x3d0] sm:$0xff] %vm2094, %v1816
    %2218 = vst.msk [vmem:[%s3 + $0x3d8] sm:$0xff] %vm2094, %v1819
    %2219 = vst.msk [vmem:[%s3 + $0x3e0] sm:$0xff] %vm2094, %v1824
    %2220 = vst.msk [vmem:[%s3 + $0x3e8] sm:$0xff] %vm2094, %v1827
    %2221 = vst.msk [vmem:[%s3 + $0x3f0] sm:$0xff] %vm2094, %v1832
    %2222 = vst.msk [vmem:[%s3 + $0x3f8] sm:$0xff] %vm2094, %v1835
    %2223 = vst.msk [vmem:[%s3 + $0x400] sm:$0xff] %vm2094, %v1840
    %2224 = vst.msk [vmem:[%s3 + $0x408] sm:$0xff] %vm2094, %v1843
    %2225 = vst.msk [vmem:[%s3 + $0x410] sm:$0xff] %vm2094, %v1848
    %2226 = vst.msk [vmem:[%s3 + $0x418] sm:$0xff] %vm2094, %v1851
    %2227 = vst.msk [vmem:[%s3 + $0x420] sm:$0xff] %vm2094, %v1856
    %2228 = vst.msk [vmem:[%s3 + $0x428] sm:$0xff] %vm2094, %v1859
    %2229 = vst.msk [vmem:[%s3 + $0x430] sm:$0xff] %vm2094, %v1864
    %2230 = vst.msk [vmem:[%s3 + $0x438] sm:$0xff] %vm2094, %v1867
    %2231 = vst.msk [vmem:[%s3 + $0x440] sm:$0xff] %vm2094, %v1872
    %2232 = vst.msk [vmem:[%s3 + $0x448] sm:$0xff] %vm2094, %v1875
    %2233 = vst.msk [vmem:[%s3 + $0x450] sm:$0xff] %vm2094, %v1880
    %2234 = vst.msk [vmem:[%s3 + $0x458] sm:$0xff] %vm2094, %v1883
    %2235 = vst.msk [vmem:[%s3 + $0x460] sm:$0xff] %vm2094, %v1888
    %2236 = vst.msk [vmem:[%s3 + $0x468] sm:$0xff] %vm2094, %v1891
    %2237 = vst.msk [vmem:[%s3 + $0x470] sm:$0xff] %vm2094, %v1896
    %2238 = vst.msk [vmem:[%s3 + $0x478] sm:$0xff] %vm2094, %v1899
    %2239 = vst.msk [vmem:[%s3 + $0x480] sm:$0xff] %vm2094, %v1904
    %2240 = vst.msk [vmem:[%s3 + $0x488] sm:$0xff] %vm2094, %v1907
    %2241 = vst.msk [vmem:[%s3 + $0x490] sm:$0xff] %vm2094, %v1912
    %2242 = vst.msk [vmem:[%s3 + $0x498] sm:$0xff] %vm2094, %v1915
    %2243 = vst.msk [vmem:[%s3 + $0x4a0] sm:$0xff] %vm2094, %v1920
    %2244 = vst.msk [vmem:[%s3 + $0x4a8] sm:$0xff] %vm2094, %v1923
    %2245 = vst.msk [vmem:[%s3 + $0x4b0] sm:$0xff] %vm2094, %v1928
    %2246 = vst.msk [vmem:[%s3 + $0x4b8] sm:$0xff] %vm2094, %v1931
    %2247 = vst.msk [vmem:[%s3 + $0x4c0] sm:$0xff] %vm2094, %v1936
    %2248 = vst.msk [vmem:[%s3 + $0x4c8] sm:$0xff] %vm2094, %v1939
    %2249 = vst.msk [vmem:[%s3 + $0x4d0] sm:$0xff] %vm2094, %v1944
    %2250 = vst.msk [vmem:[%s3 + $0x4d8] sm:$0xff] %vm2094, %v1947
    %2251 = vst.msk [vmem:[%s3 + $0x4e0] sm:$0xff] %vm2094, %v1952
    %2252 = vst.msk [vmem:[%s3 + $0x4e8] sm:$0xff] %vm2094, %v1955
    %2253 = vst.msk [vmem:[%s3 + $0x4f0] sm:$0xff] %vm2094, %v1960
    %2254 = vst.msk [vmem:[%s3 + $0x4f8] sm:$0xff] %vm2094, %v1963
    %2255 = vst.msk [vmem:[%s3 + $0x500] sm:$0xff] %vm2094, %v1968
    %2256 = vst.msk [vmem:[%s3 + $0x508] sm:$0xff] %vm2094, %v1971
    %2257 = vst.msk [vmem:[%s3 + $0x510] sm:$0xff] %vm2094, %v1976
    %2258 = vst.msk [vmem:[%s3 + $0x518] sm:$0xff] %vm2094, %v1979
    %2259 = vst.msk [vmem:[%s3 + $0x520] sm:$0xff] %vm2094, %v1984
    %2260 = vst.msk [vmem:[%s3 + $0x528] sm:$0xff] %vm2094, %v1987
    %2261 = vst.msk [vmem:[%s3 + $0x530] sm:$0xff] %vm2094, %v1992
    %2262 = vst.msk [vmem:[%s3 + $0x538] sm:$0xff] %vm2094, %v1995
    %2263 = vst.msk [vmem:[%s3 + $0x540] sm:$0xff] %vm2094, %v2000
    %2264 = vst.msk [vmem:[%s3 + $0x548] sm:$0xff] %vm2094, %v2003
    %2265 = vst.msk [vmem:[%s3 + $0x550] sm:$0xff] %vm2094, %v2008
    %2266 = vst.msk [vmem:[%s3 + $0x558] sm:$0xff] %vm2094, %v2011
    %2267 = vst.msk [vmem:[%s3 + $0x560] sm:$0xff] %vm2094, %v2016
    %2268 = vst.msk [vmem:[%s3 + $0x568] sm:$0xff] %vm2094, %v2019
    %2269 = vst.msk [vmem:[%s3 + $0x570] sm:$0xff] %vm2094, %v2024
    %2270 = vst.msk [vmem:[%s3 + $0x578] sm:$0xff] %vm2094, %v2027
    %2271 = vst.msk [vmem:[%s3 + $0x580] sm:$0xff] %vm2094, %v2032
    %2272 = vst.msk [vmem:[%s3 + $0x588] sm:$0xff] %vm2094, %v2035
    %2273 = vst.msk [vmem:[%s3 + $0x590] sm:$0xff] %vm2094, %v2040
    %2274 = vst.msk [vmem:[%s3 + $0x598] sm:$0xff] %vm2094, %v2043
    %2275 = vst.msk [vmem:[%s3 + $0x5a0] sm:$0xff] %vm2094, %v2048
    %2276 = vst.msk [vmem:[%s3 + $0x5a8] sm:$0xff] %vm2094, %v2051
    %2277 = vst.msk [vmem:[%s3 + $0x5b0] sm:$0xff] %vm2094, %v2056
    %2278 = vst.msk [vmem:[%s3 + $0x5b8] sm:$0xff] %vm2094, %v2059
    %2279 = vst.msk [vmem:[%s3 + $0x5c0] sm:$0xff] %vm2094, %v2064
    %2280 = vst.msk [vmem:[%s3 + $0x5c8] sm:$0xff] %vm2094, %v2067
    %2281 = vst.msk [vmem:[%s3 + $0x5d0] sm:$0xff] %vm2094, %v2072
    %2282 = vst.msk [vmem:[%s3 + $0x5d8] sm:$0xff] %vm2094, %v2075
    %2283 = vst.msk [vmem:[%s3 + $0x5e0] sm:$0xff] %vm2094, %v2080
    %2284 = vst.msk [vmem:[%s3 + $0x5e8] sm:$0xff] %vm2094, %v2083
    %2285 = vst.msk [vmem:[%s3 + $0x5f0] sm:$0xff] %vm2094, %v2088
    %2286 = vst.msk [vmem:[%s3 + $0x5f8] sm:$0xff] %vm2094, %v2091
    // Predicated region
    $region18: #{tpu_custom_call.1} parent=1 // pred_check
      _
    $region19: #{tpu_custom_call.1} parent=1 // pred_check_branch
      %2288 = sbr.rel (0) target = $region21
    $region20: #{tpu_custom_call.1} parent=1 // pred_region
      _
    $region21: #{tpu_custom_call.1} parent=1 // pred_fallthru
      _
    // Predicated region
    $region22: #{tpu_custom_call.1} parent=1 // pred_check
      _
    $region23: #{tpu_custom_call.1} parent=1 // pred_check_branch
      %2290 = sbr.rel (0) target = $region25
    $region24: #{tpu_custom_call.1} parent=1 // pred_region
      _
    $region25: #{tpu_custom_call.1} parent=1 // pred_fallthru
      _
    %2291 = vsyncpa [#allocation3], 1

</llo_original>
